<compile_context>
chip_gen: v5e
topology: v5e:2x2
jax: 0.10.0
libtpu: 0.0.40
codegen_flags: <defaults>
</compile_context>

<pallas_src>
import jax
import jax.numpy as jnp
from jax import lax
from jax.experimental import pallas as pl
from jax.experimental.pallas import tpu as pltpu

# ----------------------- small synthetic config -----------------------
VOCAB = 50
D_MODEL = 32
N_HEADS = 4
HEAD_DIM = D_MODEL // N_HEADS
FFN = 64
N_LAYERS = 2
MAX_POS = 64
PAD_IDX = 1
POS_OFFSET = 2          # config.extra_pos_embeddings
EMBED_SCALE = 1.0       # config.scale_embedding = False
LN_EPS = 1e-5
NEG_INF = -1e9
_SQRT1_2 = 0.7071067811865476

_PARALLEL = pltpu.CompilerParams(dimension_semantics=("parallel",))


# =========================== in-kernel helpers ===========================
def _layernorm(y, g, b):
    mu = jnp.mean(y, axis=-1, keepdims=True)
    var = jnp.mean(jnp.square(y - mu), axis=-1, keepdims=True)
    return (y - mu) * lax.rsqrt(var + LN_EPS) * g + b


def _erf_approx(x):
    # TODO(synk): switch to jax.lax.erf if/when Mosaic erf lowering is confirmed; this
    # Abramowitz & Stegun 7.1.26 rational approximation has |err| < 1.5e-7 and only
    # uses exp/mul/add/div, which lower cleanly to the EUP/VPU.
    a1, a2, a3, a4, a5 = 0.254829592, -0.284496736, 1.421413741, -1.453152027, 1.061405429
    p = 0.3275911
    sign = jnp.where(x >= 0, 1.0, -1.0)
    ax = jnp.abs(x)
    t = 1.0 / (1.0 + p * ax)
    poly = ((((a5 * t + a4) * t + a3) * t + a2) * t + a1) * t
    return sign * (1.0 - poly * jnp.exp(-ax * ax))


def _gelu_exact(x):
    return 0.5 * x * (1.0 + _erf_approx(x * _SQRT1_2))


# =============================== Pallas kernels ===============================
def _embed_ln_kernel(tok_ref, pos_ref, g_ref, b_ref, o_ref):
    # x = tok_emb * embed_scale + pos_emb ; layernorm_embedding
    x = tok_ref[0].astype(jnp.float32) * EMBED_SCALE + pos_ref[0].astype(jnp.float32)
    o_ref[0] = _layernorm(x, g_ref[...], b_ref[...]).astype(o_ref.dtype)


def _attn_block_kernel(x_ref, mask_ref, wqkv_ref, bqkv_ref, wo_ref, bo_ref,
                       g_ref, b_ref, o_ref):
    """One batch element: fused QKV proj + MHA + out proj + residual + post-LN."""
    E, H, Dh = D_MODEL, N_HEADS, HEAD_DIM
    x = x_ref[0].astype(jnp.float32)                         # [T, E]
    T = x.shape[0]
    mask = mask_ref[0]                                       # [1, S] additive (0 / -1e9)

    # fused q|k|v projection: one MXU pass over [E, 3E]
    qkv = jnp.dot(x, wqkv_ref[...], preferred_element_type=jnp.float32) + bqkv_ref[...]
    wo = wo_ref[...]
    scaling = Dh ** (-0.5)

    attn = jnp.zeros((T, E), jnp.float32)
    for h in range(H):                                       # unrolled, H is small
        q_h = qkv[:, h * Dh:(h + 1) * Dh] * scaling          # scaling folded in-kernel
        k_h = qkv[:, E + h * Dh:E + (h + 1) * Dh]
        v_h = qkv[:, 2 * E + h * Dh:2 * E + (h + 1) * Dh]
        # scores = q @ k^T without an explicit transpose (contract on Dh)
        s = lax.dot_general(q_h, k_h, (((1,), (1,)), ((), ())),
                            preferred_element_type=jnp.float32)       # [T, S]
        s = s + mask
        s = s - jnp.max(s, axis=-1, keepdims=True)
        p = jnp.exp(s)
        p = p * pl.reciprocal(jnp.sum(p, axis=-1, keepdims=True), approx=True)
        ctx = jnp.dot(p, v_h, preferred_element_type=jnp.float32)     # [T, Dh]
        # fold the per-head slice of the output projection (avoids a concat)
        attn = attn + jnp.dot(ctx, wo[h * Dh:(h + 1) * Dh, :],
                              preferred_element_type=jnp.float32)

    y = x + attn + bo_ref[...]                               # residual + out-proj bias
    o_ref[0] = _layernorm(y, g_ref[...], b_ref[...]).astype(o_ref.dtype)


def _ffn_block_kernel(x_ref, w1_ref, b1_ref, w2_ref, b2_ref, g_ref, b_ref, o_ref):
    """One batch element: fc1 + GELU + fc2 + residual + post-LN + finite clamp."""
    x = x_ref[0].astype(jnp.float32)                         # [T, E]
    h = jnp.dot(x, w1_ref[...], preferred_element_type=jnp.float32) + b1_ref[...]
    h = _gelu_exact(h)
    y = jnp.dot(h, w2_ref[...], preferred_element_type=jnp.float32) + b2_ref[...]
    y = _layernorm(x + y, g_ref[...], b_ref[...])
    # torch clamps only when an inf/nan is present; an unconditional clamp is a no-op
    # for finite activations and avoids a data-dependent branch.
    cmax = jnp.float32(jnp.finfo(jnp.float32).max)
    o_ref[0] = jnp.clip(y, -cmax, cmax).astype(o_ref.dtype)


# =============================== wrappers ===============================
def embed_layernorm(tok, pos, g, b):
    B, T, E = tok.shape
    return pl.pallas_call(
        _embed_ln_kernel,
        out_shape=jax.ShapeDtypeStruct((B, T, E), jnp.float32),
        grid=(B,),
        in_specs=[pl.BlockSpec((1, T, E), lambda i: (i, 0, 0)),
                  pl.BlockSpec((1, T, E), lambda i: (0, 0, 0)),
                  pl.BlockSpec((1, E), lambda i: (0, 0)),
                  pl.BlockSpec((1, E), lambda i: (0, 0))],
        out_specs=pl.BlockSpec((1, T, E), lambda i: (i, 0, 0)),
        compiler_params=_PARALLEL,
    )(tok, pos, g, b)


def attention_block(x, add_mask, p):
    B, T, E = x.shape
    return pl.pallas_call(
        _attn_block_kernel,
        out_shape=jax.ShapeDtypeStruct((B, T, E), x.dtype),
        grid=(B,),
        in_specs=[pl.BlockSpec((1, T, E), lambda i: (i, 0, 0)),
                  pl.BlockSpec((1, 1, T), lambda i: (i, 0, 0)),
                  pl.BlockSpec((E, 3 * E), lambda i: (0, 0)),
                  pl.BlockSpec((1, 3 * E), lambda i: (0, 0)),
                  pl.BlockSpec((E, E), lambda i: (0, 0)),
                  pl.BlockSpec((1, E), lambda i: (0, 0)),
                  pl.BlockSpec((1, E), lambda i: (0, 0)),
                  pl.BlockSpec((1, E), lambda i: (0, 0))],
        out_specs=pl.BlockSpec((1, T, E), lambda i: (i, 0, 0)),
        compiler_params=_PARALLEL,
    )(x, add_mask, p['wqkv'], p['bqkv'], p['wo'], p['bo'], p['ln_g'], p['ln_b'])


def ffn_block(x, lp):
    B, T, E = x.shape
    return pl.pallas_call(
        _ffn_block_kernel,
        out_shape=jax.ShapeDtypeStruct((B, T, E), x.dtype),
        grid=(B,),
        in_specs=[pl.BlockSpec((1, T, E), lambda i: (i, 0, 0)),
                  pl.BlockSpec((E, FFN), lambda i: (0, 0)),
                  pl.BlockSpec((1, FFN), lambda i: (0, 0)),
                  pl.BlockSpec((FFN, E), lambda i: (0, 0)),
                  pl.BlockSpec((1, E), lambda i: (0, 0)),
                  pl.BlockSpec((1, E), lambda i: (0, 0)),
                  pl.BlockSpec((1, E), lambda i: (0, 0))],
        out_specs=pl.BlockSpec((1, T, E), lambda i: (i, 0, 0)),
        compiler_params=_PARALLEL,
    )(x, lp['fc1_w'], lp['fc1_b'], lp['fc2_w'], lp['fc2_b'], lp['ln_g'], lp['ln_b'])


# =============================== model glue ===============================
def bart_encoder_forward(params, input_ids, attention_mask=None):
    """
    input_ids: [B, T] int32.
    attention_mask: optional [B, T], nonzero/True = padding token (masked to -inf),
                    matching the key_padding_mask semantics inside BartEncoder.
    Returns last_hidden_state [B, T, E] (eval mode; hidden states / attentions off).
    """
    B, T = input_ids.shape

    # embedding gathers stay in JAX glue; add + layernorm_embedding fused in a kernel
    positions = params['pos_emb'][jnp.arange(T) + POS_OFFSET]        # [T, E]
    tok = params['tok_emb'][input_ids]                               # [B, T, E]
    x = embed_layernorm(tok, positions[None], params['ln_emb_g'], params['ln_emb_b'])

    # tiny per-batch additive key-padding mask, shared by all heads inside the kernel
    if attention_mask is None:
        add_mask = jnp.zeros((B, 1, T), jnp.float32)
    else:
        add_mask = jnp.where(attention_mask.astype(bool), NEG_INF, 0.0) \
                      .astype(jnp.float32).reshape(B, 1, T)

    # 2 pallas_calls per encoder layer (post-LN / normalize_before=False)
    for lp in params['layers']:
        x = attention_block(x, add_mask, lp['attn'])
        x = ffn_block(x, lp)

    # add_final_layer_norm = False -> no extra layer norm.
    # Torch works time-major internally and transposes back to [B, T, E]; batch-major
    # is kept throughout here, which is numerically identical.
    return x


# =============================== deterministic init ===============================
def init_params(key):
    def dense(k, din, dout):
        return jax.random.normal(k, (din, dout), jnp.float32) * 0.02

    ks = jax.random.split(key, 2 + N_LAYERS)
    tok = jax.random.normal(ks[0], (VOCAB, D_MODEL), jnp.float32) * 0.02
    tok = tok.at[PAD_IDX].set(0.0)                       # nn.Embedding padding_idx row
    pos = jax.random.normal(ks[1], (MAX_POS + POS_OFFSET, D_MODEL), jnp.float32) * 0.02
    pos = pos.at[PAD_IDX].set(0.0)

    params = dict(
        tok_emb=tok, pos_emb=pos,
        ln_emb_g=jnp.ones((1, D_MODEL), jnp.float32),
        ln_emb_b=jnp.zeros((1, D_MODEL), jnp.float32),
        layers=[],
    )

    for i in range(N_LAYERS):
        lk = jax.random.split(ks[2 + i], 6)
        wq, wk, wv, wo = (dense(lk[j], D_MODEL, D_MODEL) for j in range(4))
        params['layers'].append(dict(
            attn=dict(
                wqkv=jnp.concatenate([wq, wk, wv], axis=1),          # fused [E, 3E]
                bqkv=jnp.zeros((1, 3 * D_MODEL), jnp.float32),
                wo=wo, bo=jnp.zeros((1, D_MODEL), jnp.float32),
                ln_g=jnp.ones((1, D_MODEL), jnp.float32),            # self_attn_layer_norm
                ln_b=jnp.zeros((1, D_MODEL), jnp.float32),
            ),
            fc1_w=dense(lk[4], D_MODEL, FFN), fc1_b=jnp.zeros((1, FFN), jnp.float32),
            fc2_w=dense(lk[5], FFN, D_MODEL), fc2_b=jnp.zeros((1, D_MODEL), jnp.float32),
            ln_g=jnp.ones((1, D_MODEL), jnp.float32),                # final_layer_norm
            ln_b=jnp.zeros((1, D_MODEL), jnp.float32),
        ))
    return params


# =============================== main ===============================
if __name__ == "__main__":
    key = jax.random.PRNGKey(0)
    pkey, ikey = jax.random.split(key)

    params = init_params(pkey)

    B, T = 2, 8
    input_ids = jax.random.randint(ikey, (B, T), 2, VOCAB, dtype=jnp.int32)
    # pad the last two positions of batch element 1 to exercise the key-padding mask
    input_ids = input_ids.at[1, T - 2:].set(PAD_IDX)
    attention_mask = jnp.zeros((B, T), jnp.bool_).at[1, T - 2:].set(True)

    fwd = jax.jit(bart_encoder_forward)
    out = fwd(params, input_ids, attention_mask)
    jax.block_until_ready(out)

    assert out.shape == (B, T, D_MODEL), out.shape
    assert out.dtype == jnp.float32
    assert bool(jnp.all(jnp.isfinite(out)))
    print("KERNEL_OK")
</pallas_src>

<mosaic_0001>
module attributes {stable_mosaic.version = 11 : i64} {
  func.func @_embed_ln_kernel(%arg0: i32, %arg1: memref<1x8x32xf32, #tpu.memory_space<vmem>>, %arg2: memref<1x8x32xf32, #tpu.memory_space<vmem>>, %arg3: memref<1x32xf32, #tpu.memory_space<vmem>>, %arg4: memref<1x32xf32, #tpu.memory_space<vmem>>, %arg5: memref<1x8x32xf32, #tpu.memory_space<vmem>>) attributes {dimension_semantics = [#tpu.dimension_semantics<parallel>], iteration_bounds = array<i64: 2>, scalar_prefetch = 0 : i64, scratch_operands = 0 : i64, tpu.core_type = #tpu.core_type<tc>, window_params = [{transform_indices = @transform_0, window_bounds = array<i64: 1, 8, 32>}, {pipeline_mode = #tpu.pipeline_mode<synchronous>, transform_indices = @transform_1, window_bounds = array<i64: 1, 8, 32>}, {pipeline_mode = #tpu.pipeline_mode<synchronous>, transform_indices = @transform_2, window_bounds = array<i64: 1, 32>}, {pipeline_mode = #tpu.pipeline_mode<synchronous>, transform_indices = @transform_3, window_bounds = array<i64: 1, 32>}, {transform_indices = @transform_4, window_bounds = array<i64: 1, 8, 32>}]} {
    %c0 = arith.constant 0 : index
    %c0_0 = arith.constant 0 : index
    %c0_1 = arith.constant 0 : index
    %0 = vector.load %arg1[%c0, %c0_0, %c0_1] : memref<1x8x32xf32, #tpu.memory_space<vmem>>, vector<1x8x32xf32>
    %1 = vector.shape_cast %0 : vector<1x8x32xf32> to vector<8x32xf32>
    %cst = arith.constant 1.000000e+00 : f32
    %2 = vector.broadcast %cst : f32 to vector<8x32xf32>
    %3 = arith.mulf %1, %2 : vector<8x32xf32>
    %c0_2 = arith.constant 0 : index
    %c0_3 = arith.constant 0 : index
    %c0_4 = arith.constant 0 : index
    %4 = vector.load %arg2[%c0_2, %c0_3, %c0_4] : memref<1x8x32xf32, #tpu.memory_space<vmem>>, vector<1x8x32xf32>
    %5 = vector.shape_cast %4 : vector<1x8x32xf32> to vector<8x32xf32>
    %6 = arith.addf %3, %5 : vector<8x32xf32>
    %c0_5 = arith.constant 0 : index
    %c0_6 = arith.constant 0 : index
    %7 = vector.load %arg3[%c0_5, %c0_6] : memref<1x32xf32, #tpu.memory_space<vmem>>, vector<1x32xf32>
    %c0_7 = arith.constant 0 : index
    %c0_8 = arith.constant 0 : index
    %8 = vector.load %arg4[%c0_7, %c0_8] : memref<1x32xf32, #tpu.memory_space<vmem>>, vector<1x32xf32>
    %cst_9 = arith.constant dense<0.000000e+00> : vector<8xf32>
    %9 = vector.multi_reduction <add>, %6, %cst_9 [1] : vector<8x32xf32> to vector<8xf32>
    %10 = vector.shape_cast %9 : vector<8xf32> to vector<8x1xf32>
    %cst_10 = arith.constant 3.200000e+01 : f32
    %11 = vector.broadcast %cst_10 : f32 to vector<8x1xf32>
    %12 = arith.divf %10, %11 : vector<8x1xf32>
    %13 = vector.broadcast %12 : vector<8x1xf32> to vector<8x32xf32>
    %14 = arith.subf %6, %13 : vector<8x32xf32>
    %15 = arith.mulf %14, %14 : vector<8x32xf32>
    %cst_11 = arith.constant dense<0.000000e+00> : vector<8xf32>
    %16 = vector.multi_reduction <add>, %15, %cst_11 [1] : vector<8x32xf32> to vector<8xf32>
    %17 = vector.shape_cast %16 : vector<8xf32> to vector<8x1xf32>
    %cst_12 = arith.constant 3.200000e+01 : f32
    %18 = vector.broadcast %cst_12 : f32 to vector<8x1xf32>
    %19 = arith.divf %17, %18 : vector<8x1xf32>
    %20 = vector.broadcast %12 : vector<8x1xf32> to vector<8x32xf32>
    %21 = arith.subf %6, %20 : vector<8x32xf32>
    %cst_13 = arith.constant 9.99999974E-6 : f32
    %22 = vector.broadcast %cst_13 : f32 to vector<8x1xf32>
    %23 = arith.addf %19, %22 : vector<8x1xf32>
    %24 = math.rsqrt %23 : vector<8x1xf32>
    %25 = vector.broadcast %24 : vector<8x1xf32> to vector<8x32xf32>
    %26 = arith.mulf %21, %25 : vector<8x32xf32>
    %27 = vector.broadcast %7 : vector<1x32xf32> to vector<8x32xf32>
    %28 = arith.mulf %26, %27 : vector<8x32xf32>
    %29 = vector.broadcast %8 : vector<1x32xf32> to vector<8x32xf32>
    %30 = arith.addf %28, %29 : vector<8x32xf32>
    %c0_14 = arith.constant 0 : index
    %c0_15 = arith.constant 0 : index
    %c0_16 = arith.constant 0 : index
    %31 = vector.load %arg5[%c0_14, %c0_15, %c0_16] : memref<1x8x32xf32, #tpu.memory_space<vmem>>, vector<1x8x32xf32>
    %32 = vector.shape_cast %31 : vector<1x8x32xf32> to vector<8x32xf32>
    %33 = vector.shape_cast %30 : vector<8x32xf32> to vector<1x8x32xf32>
    tpu.vector_store %arg5[%c0_14, %c0_15, %c0_16], %33 {strides = array<i32>} : memref<1x8x32xf32, #tpu.memory_space<vmem>>, vector<1x8x32xf32>,
    return
  }
  func.func @transform_0(%arg0: i32) -> (i32, i32, i32) {
    %c0_i32 = arith.constant 0 : i32
    %c0_i32_0 = arith.constant 0 : i32
    %c0_i32_1 = arith.constant 0 : i32
    return %arg0, %c0_i32, %c0_i32_0 : i32, i32, i32
  }
  func.func @transform_1(%arg0: i32) -> (i32, i32, i32) {
    %c0_i32 = arith.constant 0 : i32
    %c0_i32_0 = arith.constant 0 : i32
    %c0_i32_1 = arith.constant 0 : i32
    %c0_i32_2 = arith.constant 0 : i32
    return %c0_i32, %c0_i32_0, %c0_i32_1 : i32, i32, i32
  }
  func.func @transform_2(%arg0: i32) -> (i32, i32) {
    %c0_i32 = arith.constant 0 : i32
    %c0_i32_0 = arith.constant 0 : i32
    %c0_i32_1 = arith.constant 0 : i32
    return %c0_i32, %c0_i32_0 : i32, i32
  }
  func.func @transform_3(%arg0: i32) -> (i32, i32) {
    %c0_i32 = arith.constant 0 : i32
    %c0_i32_0 = arith.constant 0 : i32
    %c0_i32_1 = arith.constant 0 : i32
    return %c0_i32, %c0_i32_0 : i32, i32
  }
  func.func @transform_4(%arg0: i32) -> (i32, i32, i32) {
    %c0_i32 = arith.constant 0 : i32
    %c0_i32_0 = arith.constant 0 : i32
    %c0_i32_1 = arith.constant 0 : i32
    return %arg0, %c0_i32, %c0_i32_0 : i32, i32, i32
  }
}

module attributes {stable_mosaic.version = 11 : i64} {
  func.func @_attn_block_kernel(%arg0: i32, %arg1: memref<1x8x32xf32, #tpu.memory_space<vmem>>, %arg2: memref<1x1x8xf32, #tpu.memory_space<vmem>>, %arg3: memref<32x96xf32, #tpu.memory_space<vmem>>, %arg4: memref<1x96xf32, #tpu.memory_space<vmem>>, %arg5: memref<32x32xf32, #tpu.memory_space<vmem>>, %arg6: memref<1x32xf32, #tpu.memory_space<vmem>>, %arg7: memref<1x32xf32, #tpu.memory_space<vmem>>, %arg8: memref<1x32xf32, #tpu.memory_space<vmem>>, %arg9: memref<1x8x32xf32, #tpu.memory_space<vmem>>) attributes {dimension_semantics = [#tpu.dimension_semantics<parallel>], iteration_bounds = array<i64: 2>, scalar_prefetch = 0 : i64, scratch_operands = 0 : i64, tpu.core_type = #tpu.core_type<tc>, window_params = [{transform_indices = @transform_0, window_bounds = array<i64: 1, 8, 32>}, {transform_indices = @transform_1, window_bounds = array<i64: 1, 1, 8>}, {pipeline_mode = #tpu.pipeline_mode<synchronous>, transform_indices = @transform_2, window_bounds = array<i64: 32, 96>}, {pipeline_mode = #tpu.pipeline_mode<synchronous>, transform_indices = @transform_3, window_bounds = array<i64: 1, 96>}, {pipeline_mode = #tpu.pipeline_mode<synchronous>, transform_indices = @transform_4, window_bounds = array<i64: 32, 32>}, {pipeline_mode = #tpu.pipeline_mode<synchronous>, transform_indices = @transform_5, window_bounds = array<i64: 1, 32>}, {pipeline_mode = #tpu.pipeline_mode<synchronous>, transform_indices = @transform_6, window_bounds = array<i64: 1, 32>}, {pipeline_mode = #tpu.pipeline_mode<synchronous>, transform_indices = @transform_7, window_bounds = array<i64: 1, 32>}, {transform_indices = @transform_8, window_bounds = array<i64: 1, 8, 32>}]} {
    %c0 = arith.constant 0 : index
    %c0_0 = arith.constant 0 : index
    %c0_1 = arith.constant 0 : index
    %0 = vector.load %arg1[%c0, %c0_0, %c0_1] : memref<1x8x32xf32, #tpu.memory_space<vmem>>, vector<1x8x32xf32>
    %1 = vector.shape_cast %0 : vector<1x8x32xf32> to vector<8x32xf32>
    %c0_2 = arith.constant 0 : index
    %c0_3 = arith.constant 0 : index
    %c0_4 = arith.constant 0 : index
    %2 = vector.load %arg2[%c0_2, %c0_3, %c0_4] : memref<1x1x8xf32, #tpu.memory_space<vmem>>, vector<1x1x8xf32>
    %3 = vector.shape_cast %2 : vector<1x1x8xf32> to vector<1x8xf32>
    %c0_5 = arith.constant 0 : index
    %c0_6 = arith.constant 0 : index
    %4 = vector.load %arg3[%c0_5, %c0_6] : memref<32x96xf32, #tpu.memory_space<vmem>>, vector<32x96xf32>
    %cst = arith.constant dense<0.000000e+00> : vector<8x96xf32>
    %5 = tpu.matmul %1, %4, %cst {dimension_numbers = #tpu.dot_dimension_numbers<[1], [0], [0], [1], [0, 0, 1, 1], [], []>} : vector<8x32xf32>, vector<32x96xf32>, vector<8x96xf32> -> vector<8x96xf32>
    %c0_7 = arith.constant 0 : index
    %c0_8 = arith.constant 0 : index
    %6 = vector.load %arg4[%c0_7, %c0_8] : memref<1x96xf32, #tpu.memory_space<vmem>>, vector<1x96xf32>
    %7 = vector.broadcast %6 : vector<1x96xf32> to vector<8x96xf32>
    %8 = arith.addf %5, %7 : vector<8x96xf32>
    %c0_9 = arith.constant 0 : index
    %c0_10 = arith.constant 0 : index
    %9 = vector.load %arg5[%c0_9, %c0_10] : memref<32x32xf32, #tpu.memory_space<vmem>>, vector<32x32xf32>
    %cst_11 = arith.constant 0.000000e+00 : f32
    %10 = vector.broadcast %cst_11 : f32 to vector<8x32xf32>
    %11 = vector.extract_strided_slice %8 {offsets = [0, 0], sizes = [8, 8], strides = [1, 1]} : vector<8x96xf32> to vector<8x8xf32>
    %cst_12 = arith.constant 0.353553385 : f32
    %12 = vector.broadcast %cst_12 : f32 to vector<8x8xf32>
    %13 = arith.mulf %11, %12 : vector<8x8xf32>
    %14 = vector.extract_strided_slice %8 {offsets = [0, 32], sizes = [8, 8], strides = [1, 1]} : vector<8x96xf32> to vector<8x8xf32>
    %15 = vector.extract_strided_slice %8 {offsets = [0, 64], sizes = [8, 8], strides = [1, 1]} : vector<8x96xf32> to vector<8x8xf32>
    %cst_13 = arith.constant dense<0.000000e+00> : vector<8x8xf32>
    %16 = tpu.matmul %13, %14, %cst_13 {dimension_numbers = #tpu.dot_dimension_numbers<[1], [1], [0], [0], [0, 0, 1, 0], [], []>} : vector<8x8xf32>, vector<8x8xf32>, vector<8x8xf32> -> vector<8x8xf32>
    %17 = vector.broadcast %3 : vector<1x8xf32> to vector<8x8xf32>
    %18 = arith.addf %16, %17 : vector<8x8xf32>
    %cst_14 = arith.constant dense<0xFF800000> : vector<8xf32>
    %19 = vector.multi_reduction <maximumf>, %18, %cst_14 [1] : vector<8x8xf32> to vector<8xf32>
    %20 = vector.shape_cast %19 : vector<8xf32> to vector<8x1xf32>
    %21 = vector.broadcast %20 : vector<8x1xf32> to vector<8x8xf32>
    %22 = arith.subf %18, %21 : vector<8x8xf32>
    %23 = math.exp %22 : vector<8x8xf32>
    %cst_15 = arith.constant dense<0.000000e+00> : vector<8xf32>
    %24 = vector.multi_reduction <add>, %23, %cst_15 [1] : vector<8x8xf32> to vector<8xf32>
    %25 = vector.shape_cast %24 : vector<8xf32> to vector<8x1xf32>
    %26 = tpu.reciprocal %25 {approx = true} : vector<8x1xf32> -> vector<8x1xf32>
    %27 = vector.broadcast %26 : vector<8x1xf32> to vector<8x8xf32>
    %28 = arith.mulf %23, %27 : vector<8x8xf32>
    %cst_16 = arith.constant dense<0.000000e+00> : vector<8x8xf32>
    %29 = tpu.matmul %28, %15, %cst_16 {dimension_numbers = #tpu.dot_dimension_numbers<[1], [0], [0], [1], [0, 0, 1, 1], [], []>} : vector<8x8xf32>, vector<8x8xf32>, vector<8x8xf32> -> vector<8x8xf32>
    %30 = vector.extract_strided_slice %9 {offsets = [0, 0], sizes = [8, 32], strides = [1, 1]} : vector<32x32xf32> to vector<8x32xf32>
    %cst_17 = arith.constant dense<0.000000e+00> : vector<8x32xf32>
    %31 = tpu.matmul %29, %30, %cst_17 {dimension_numbers = #tpu.dot_dimension_numbers<[1], [0], [0], [1], [0, 0, 1, 1], [], []>} : vector<8x8xf32>, vector<8x32xf32>, vector<8x32xf32> -> vector<8x32xf32>
    %32 = arith.addf %10, %31 : vector<8x32xf32>
    %33 = vector.extract_strided_slice %8 {offsets = [0, 8], sizes = [8, 8], strides = [1, 1]} : vector<8x96xf32> to vector<8x8xf32>
    %cst_18 = arith.constant 0.353553385 : f32
    %34 = vector.broadcast %cst_18 : f32 to vector<8x8xf32>
    %35 = arith.mulf %33, %34 : vector<8x8xf32>
    %36 = vector.extract_strided_slice %8 {offsets = [0, 40], sizes = [8, 8], strides = [1, 1]} : vector<8x96xf32> to vector<8x8xf32>
    %37 = vector.extract_strided_slice %8 {offsets = [0, 72], sizes = [8, 8], strides = [1, 1]} : vector<8x96xf32> to vector<8x8xf32>
    %cst_19 = arith.constant dense<0.000000e+00> : vector<8x8xf32>
    %38 = tpu.matmul %35, %36, %cst_19 {dimension_numbers = #tpu.dot_dimension_numbers<[1], [1], [0], [0], [0, 0, 1, 0], [], []>} : vector<8x8xf32>, vector<8x8xf32>, vector<8x8xf32> -> vector<8x8xf32>
    %39 = vector.broadcast %3 : vector<1x8xf32> to vector<8x8xf32>
    %40 = arith.addf %38, %39 : vector<8x8xf32>
    %cst_20 = arith.constant dense<0xFF800000> : vector<8xf32>
    %41 = vector.multi_reduction <maximumf>, %40, %cst_20 [1] : vector<8x8xf32> to vector<8xf32>
    %42 = vector.shape_cast %41 : vector<8xf32> to vector<8x1xf32>
    %43 = vector.broadcast %42 : vector<8x1xf32> to vector<8x8xf32>
    %44 = arith.subf %40, %43 : vector<8x8xf32>
    %45 = math.exp %44 : vector<8x8xf32>
    %cst_21 = arith.constant dense<0.000000e+00> : vector<8xf32>
    %46 = vector.multi_reduction <add>, %45, %cst_21 [1] : vector<8x8xf32> to vector<8xf32>
    %47 = vector.shape_cast %46 : vector<8xf32> to vector<8x1xf32>
    %48 = tpu.reciprocal %47 {approx = true} : vector<8x1xf32> -> vector<8x1xf32>
    %49 = vector.broadcast %48 : vector<8x1xf32> to vector<8x8xf32>
    %50 = arith.mulf %45, %49 : vector<8x8xf32>
    %cst_22 = arith.constant dense<0.000000e+00> : vector<8x8xf32>
    %51 = tpu.matmul %50, %37, %cst_22 {dimension_numbers = #tpu.dot_dimension_numbers<[1], [0], [0], [1], [0, 0, 1, 1], [], []>} : vector<8x8xf32>, vector<8x8xf32>, vector<8x8xf32> -> vector<8x8xf32>
    %52 = vector.extract_strided_slice %9 {offsets = [8, 0], sizes = [8, 32], strides = [1, 1]} : vector<32x32xf32> to vector<8x32xf32>
    %cst_23 = arith.constant dense<0.000000e+00> : vector<8x32xf32>
    %53 = tpu.matmul %51, %52, %cst_23 {dimension_numbers = #tpu.dot_dimension_numbers<[1], [0], [0], [1], [0, 0, 1, 1], [], []>} : vector<8x8xf32>, vector<8x32xf32>, vector<8x32xf32> -> vector<8x32xf32>
    %54 = arith.addf %32, %53 : vector<8x32xf32>
    %55 = vector.extract_strided_slice %8 {offsets = [0, 16], sizes = [8, 8], strides = [1, 1]} : vector<8x96xf32> to vector<8x8xf32>
    %cst_24 = arith.constant 0.353553385 : f32
    %56 = vector.broadcast %cst_24 : f32 to vector<8x8xf32>
    %57 = arith.mulf %55, %56 : vector<8x8xf32>
    %58 = vector.extract_strided_slice %8 {offsets = [0, 48], sizes = [8, 8], strides = [1, 1]} : vector<8x96xf32> to vector<8x8xf32>
    %59 = vector.extract_strided_slice %8 {offsets = [0, 80], sizes = [8, 8], strides = [1, 1]} : vector<8x96xf32> to vector<8x8xf32>
    %cst_25 = arith.constant dense<0.000000e+00> : vector<8x8xf32>
    %60 = tpu.matmul %57, %58, %cst_25 {dimension_numbers = #tpu.dot_dimension_numbers<[1], [1], [0], [0], [0, 0, 1, 0], [], []>} : vector<8x8xf32>, vector<8x8xf32>, vector<8x8xf32> -> vector<8x8xf32>
    %61 = vector.broadcast %3 : vector<1x8xf32> to vector<8x8xf32>
    %62 = arith.addf %60, %61 : vector<8x8xf32>
    %cst_26 = arith.constant dense<0xFF800000> : vector<8xf32>
    %63 = vector.multi_reduction <maximumf>, %62, %cst_26 [1] : vector<8x8xf32> to vector<8xf32>
    %64 = vector.shape_cast %63 : vector<8xf32> to vector<8x1xf32>
    %65 = vector.broadcast %64 : vector<8x1xf32> to vector<8x8xf32>
    %66 = arith.subf %62, %65 : vector<8x8xf32>
    %67 = math.exp %66 : vector<8x8xf32>
    %cst_27 = arith.constant dense<0.000000e+00> : vector<8xf32>
    %68 = vector.multi_reduction <add>, %67, %cst_27 [1] : vector<8x8xf32> to vector<8xf32>
    %69 = vector.shape_cast %68 : vector<8xf32> to vector<8x1xf32>
    %70 = tpu.reciprocal %69 {approx = true} : vector<8x1xf32> -> vector<8x1xf32>
    %71 = vector.broadcast %70 : vector<8x1xf32> to vector<8x8xf32>
    %72 = arith.mulf %67, %71 : vector<8x8xf32>
    %cst_28 = arith.constant dense<0.000000e+00> : vector<8x8xf32>
    %73 = tpu.matmul %72, %59, %cst_28 {dimension_numbers = #tpu.dot_dimension_numbers<[1], [0], [0], [1], [0, 0, 1, 1], [], []>} : vector<8x8xf32>, vector<8x8xf32>, vector<8x8xf32> -> vector<8x8xf32>
    %74 = vector.extract_strided_slice %9 {offsets = [16, 0], sizes = [8, 32], strides = [1, 1]} : vector<32x32xf32> to vector<8x32xf32>
    %cst_29 = arith.constant dense<0.000000e+00> : vector<8x32xf32>
    %75 = tpu.matmul %73, %74, %cst_29 {dimension_numbers = #tpu.dot_dimension_numbers<[1], [0], [0], [1], [0, 0, 1, 1], [], []>} : vector<8x8xf32>, vector<8x32xf32>, vector<8x32xf32> -> vector<8x32xf32>
    %76 = arith.addf %54, %75 : vector<8x32xf32>
    %77 = vector.extract_strided_slice %8 {offsets = [0, 24], sizes = [8, 8], strides = [1, 1]} : vector<8x96xf32> to vector<8x8xf32>
    %cst_30 = arith.constant 0.353553385 : f32
    %78 = vector.broadcast %cst_30 : f32 to vector<8x8xf32>
    %79 = arith.mulf %77, %78 : vector<8x8xf32>
    %80 = vector.extract_strided_slice %8 {offsets = [0, 56], sizes = [8, 8], strides = [1, 1]} : vector<8x96xf32> to vector<8x8xf32>
    %81 = vector.extract_strided_slice %8 {offsets = [0, 88], sizes = [8, 8], strides = [1, 1]} : vector<8x96xf32> to vector<8x8xf32>
    %cst_31 = arith.constant dense<0.000000e+00> : vector<8x8xf32>
    %82 = tpu.matmul %79, %80, %cst_31 {dimension_numbers = #tpu.dot_dimension_numbers<[1], [1], [0], [0], [0, 0, 1, 0], [], []>} : vector<8x8xf32>, vector<8x8xf32>, vector<8x8xf32> -> vector<8x8xf32>
    %83 = vector.broadcast %3 : vector<1x8xf32> to vector<8x8xf32>
    %84 = arith.addf %82, %83 : vector<8x8xf32>
    %cst_32 = arith.constant dense<0xFF800000> : vector<8xf32>
    %85 = vector.multi_reduction <maximumf>, %84, %cst_32 [1] : vector<8x8xf32> to vector<8xf32>
    %86 = vector.shape_cast %85 : vector<8xf32> to vector<8x1xf32>
    %87 = vector.broadcast %86 : vector<8x1xf32> to vector<8x8xf32>
    %88 = arith.subf %84, %87 : vector<8x8xf32>
    %89 = math.exp %88 : vector<8x8xf32>
    %cst_33 = arith.constant dense<0.000000e+00> : vector<8xf32>
    %90 = vector.multi_reduction <add>, %89, %cst_33 [1] : vector<8x8xf32> to vector<8xf32>
    %91 = vector.shape_cast %90 : vector<8xf32> to vector<8x1xf32>
    %92 = tpu.reciprocal %91 {approx = true} : vector<8x1xf32> -> vector<8x1xf32>
    %93 = vector.broadcast %92 : vector<8x1xf32> to vector<8x8xf32>
    %94 = arith.mulf %89, %93 : vector<8x8xf32>
    %cst_34 = arith.constant dense<0.000000e+00> : vector<8x8xf32>
    %95 = tpu.matmul %94, %81, %cst_34 {dimension_numbers = #tpu.dot_dimension_numbers<[1], [0], [0], [1], [0, 0, 1, 1], [], []>} : vector<8x8xf32>, vector<8x8xf32>, vector<8x8xf32> -> vector<8x8xf32>
    %96 = vector.extract_strided_slice %9 {offsets = [24, 0], sizes = [8, 32], strides = [1, 1]} : vector<32x32xf32> to vector<8x32xf32>
    %cst_35 = arith.constant dense<0.000000e+00> : vector<8x32xf32>
    %97 = tpu.matmul %95, %96, %cst_35 {dimension_numbers = #tpu.dot_dimension_numbers<[1], [0], [0], [1], [0, 0, 1, 1], [], []>} : vector<8x8xf32>, vector<8x32xf32>, vector<8x32xf32> -> vector<8x32xf32>
    %98 = arith.addf %76, %97 : vector<8x32xf32>
    %99 = arith.addf %1, %98 : vector<8x32xf32>
    %c0_36 = arith.constant 0 : index
    %c0_37 = arith.constant 0 : index
    %100 = vector.load %arg6[%c0_36, %c0_37] : memref<1x32xf32, #tpu.memory_space<vmem>>, vector<1x32xf32>
    %101 = vector.broadcast %100 : vector<1x32xf32> to vector<8x32xf32>
    %102 = arith.addf %99, %101 : vector<8x32xf32>
    %c0_38 = arith.constant 0 : index
    %c0_39 = arith.constant 0 : index
    %103 = vector.load %arg7[%c0_38, %c0_39] : memref<1x32xf32, #tpu.memory_space<vmem>>, vector<1x32xf32>
    %c0_40 = arith.constant 0 : index
    %c0_41 = arith.constant 0 : index
    %104 = vector.load %arg8[%c0_40, %c0_41] : memref<1x32xf32, #tpu.memory_space<vmem>>, vector<1x32xf32>
    %cst_42 = arith.constant dense<0.000000e+00> : vector<8xf32>
    %105 = vector.multi_reduction <add>, %102, %cst_42 [1] : vector<8x32xf32> to vector<8xf32>
    %106 = vector.shape_cast %105 : vector<8xf32> to vector<8x1xf32>
    %cst_43 = arith.constant 3.200000e+01 : f32
    %107 = vector.broadcast %cst_43 : f32 to vector<8x1xf32>
    %108 = arith.divf %106, %107 : vector<8x1xf32>
    %109 = vector.broadcast %108 : vector<8x1xf32> to vector<8x32xf32>
    %110 = arith.subf %102, %109 : vector<8x32xf32>
    %111 = arith.mulf %110, %110 : vector<8x32xf32>
    %cst_44 = arith.constant dense<0.000000e+00> : vector<8xf32>
    %112 = vector.multi_reduction <add>, %111, %cst_44 [1] : vector<8x32xf32> to vector<8xf32>
    %113 = vector.shape_cast %112 : vector<8xf32> to vector<8x1xf32>
    %cst_45 = arith.constant 3.200000e+01 : f32
    %114 = vector.broadcast %cst_45 : f32 to vector<8x1xf32>
    %115 = arith.divf %113, %114 : vector<8x1xf32>
    %116 = vector.broadcast %108 : vector<8x1xf32> to vector<8x32xf32>
    %117 = arith.subf %102, %116 : vector<8x32xf32>
    %cst_46 = arith.constant 9.99999974E-6 : f32
    %118 = vector.broadcast %cst_46 : f32 to vector<8x1xf32>
    %119 = arith.addf %115, %118 : vector<8x1xf32>
    %120 = math.rsqrt %119 : vector<8x1xf32>
    %121 = vector.broadcast %120 : vector<8x1xf32> to vector<8x32xf32>
    %122 = arith.mulf %117, %121 : vector<8x32xf32>
    %123 = vector.broadcast %103 : vector<1x32xf32> to vector<8x32xf32>
    %124 = arith.mulf %122, %123 : vector<8x32xf32>
    %125 = vector.broadcast %104 : vector<1x32xf32> to vector<8x32xf32>
    %126 = arith.addf %124, %125 : vector<8x32xf32>
    %c0_47 = arith.constant 0 : index
    %c0_48 = arith.constant 0 : index
    %c0_49 = arith.constant 0 : index
    %127 = vector.load %arg9[%c0_47, %c0_48, %c0_49] : memref<1x8x32xf32, #tpu.memory_space<vmem>>, vector<1x8x32xf32>
    %128 = vector.shape_cast %127 : vector<1x8x32xf32> to vector<8x32xf32>
    %129 = vector.shape_cast %126 : vector<8x32xf32> to vector<1x8x32xf32>
    tpu.vector_store %arg9[%c0_47, %c0_48, %c0_49], %129 {strides = array<i32>} : memref<1x8x32xf32, #tpu.memory_space<vmem>>, vector<1x8x32xf32>,
    return
  }
  func.func @transform_0(%arg0: i32) -> (i32, i32, i32) {
    %c0_i32 = arith.constant 0 : i32
    %c0_i32_0 = arith.constant 0 : i32
    %c0_i32_1 = arith.constant 0 : i32
    return %arg0, %c0_i32, %c0_i32_0 : i32, i32, i32
  }
  func.func @transform_1(%arg0: i32) -> (i32, i32, i32) {
    %c0_i32 = arith.constant 0 : i32
    %c0_i32_0 = arith.constant 0 : i32
    %c0_i32_1 = arith.constant 0 : i32
    return %arg0, %c0_i32, %c0_i32_0 : i32, i32, i32
  }
  func.func @transform_2(%arg0: i32) -> (i32, i32) {
    %c0_i32 = arith.constant 0 : i32
    %c0_i32_0 = arith.constant 0 : i32
    %c0_i32_1 = arith.constant 0 : i32
    return %c0_i32, %c0_i32_0 : i32, i32
  }
  func.func @transform_3(%arg0: i32) -> (i32, i32) {
    %c0_i32 = arith.constant 0 : i32
    %c0_i32_0 = arith.constant 0 : i32
    %c0_i32_1 = arith.constant 0 : i32
    return %c0_i32, %c0_i32_0 : i32, i32
  }
  func.func @transform_4(%arg0: i32) -> (i32, i32) {
    %c0_i32 = arith.constant 0 : i32
    %c0_i32_0 = arith.constant 0 : i32
    %c0_i32_1 = arith.constant 0 : i32
    return %c0_i32, %c0_i32_0 : i32, i32
  }
  func.func @transform_5(%arg0: i32) -> (i32, i32) {
    %c0_i32 = arith.constant 0 : i32
    %c0_i32_0 = arith.constant 0 : i32
    %c0_i32_1 = arith.constant 0 : i32
    return %c0_i32, %c0_i32_0 : i32, i32
  }
  func.func @transform_6(%arg0: i32) -> (i32, i32) {
    %c0_i32 = arith.constant 0 : i32
    %c0_i32_0 = arith.constant 0 : i32
    %c0_i32_1 = arith.constant 0 : i32
    return %c0_i32, %c0_i32_0 : i32, i32
  }
  func.func @transform_7(%arg0: i32) -> (i32, i32) {
    %c0_i32 = arith.constant 0 : i32
    %c0_i32_0 = arith.constant 0 : i32
    %c0_i32_1 = arith.constant 0 : i32
    return %c0_i32, %c0_i32_0 : i32, i32
  }
  func.func @transform_8(%arg0: i32) -> (i32, i32, i32) {
    %c0_i32 = arith.constant 0 : i32
    %c0_i32_0 = arith.constant 0 : i32
    %c0_i32_1 = arith.constant 0 : i32
    return %arg0, %c0_i32, %c0_i32_0 : i32, i32, i32
  }
}

module attributes {stable_mosaic.version = 11 : i64} {
  func.func @_ffn_block_kernel(%arg0: i32, %arg1: memref<1x8x32xf32, #tpu.memory_space<vmem>>, %arg2: memref<32x64xf32, #tpu.memory_space<vmem>>, %arg3: memref<1x64xf32, #tpu.memory_space<vmem>>, %arg4: memref<64x32xf32, #tpu.memory_space<vmem>>, %arg5: memref<1x32xf32, #tpu.memory_space<vmem>>, %arg6: memref<1x32xf32, #tpu.memory_space<vmem>>, %arg7: memref<1x32xf32, #tpu.memory_space<vmem>>, %arg8: memref<1x8x32xf32, #tpu.memory_space<vmem>>) attributes {dimension_semantics = [#tpu.dimension_semantics<parallel>], iteration_bounds = array<i64: 2>, scalar_prefetch = 0 : i64, scratch_operands = 0 : i64, tpu.core_type = #tpu.core_type<tc>, window_params = [{transform_indices = @transform_0, window_bounds = array<i64: 1, 8, 32>}, {pipeline_mode = #tpu.pipeline_mode<synchronous>, transform_indices = @transform_1, window_bounds = array<i64: 32, 64>}, {pipeline_mode = #tpu.pipeline_mode<synchronous>, transform_indices = @transform_2, window_bounds = array<i64: 1, 64>}, {pipeline_mode = #tpu.pipeline_mode<synchronous>, transform_indices = @transform_3, window_bounds = array<i64: 64, 32>}, {pipeline_mode = #tpu.pipeline_mode<synchronous>, transform_indices = @transform_4, window_bounds = array<i64: 1, 32>}, {pipeline_mode = #tpu.pipeline_mode<synchronous>, transform_indices = @transform_5, window_bounds = array<i64: 1, 32>}, {pipeline_mode = #tpu.pipeline_mode<synchronous>, transform_indices = @transform_6, window_bounds = array<i64: 1, 32>}, {transform_indices = @transform_7, window_bounds = array<i64: 1, 8, 32>}]} {
    %c0 = arith.constant 0 : index
    %c0_0 = arith.constant 0 : index
    %c0_1 = arith.constant 0 : index
    %0 = vector.load %arg1[%c0, %c0_0, %c0_1] : memref<1x8x32xf32, #tpu.memory_space<vmem>>, vector<1x8x32xf32>
    %1 = vector.shape_cast %0 : vector<1x8x32xf32> to vector<8x32xf32>
    %c0_2 = arith.constant 0 : index
    %c0_3 = arith.constant 0 : index
    %2 = vector.load %arg2[%c0_2, %c0_3] : memref<32x64xf32, #tpu.memory_space<vmem>>, vector<32x64xf32>
    %cst = arith.constant dense<0.000000e+00> : vector<8x64xf32>
    %3 = tpu.matmul %1, %2, %cst {dimension_numbers = #tpu.dot_dimension_numbers<[1], [0], [0], [1], [0, 0, 1, 1], [], []>} : vector<8x32xf32>, vector<32x64xf32>, vector<8x64xf32> -> vector<8x64xf32>
    %c0_4 = arith.constant 0 : index
    %c0_5 = arith.constant 0 : index
    %4 = vector.load %arg3[%c0_4, %c0_5] : memref<1x64xf32, #tpu.memory_space<vmem>>, vector<1x64xf32>
    %5 = vector.broadcast %4 : vector<1x64xf32> to vector<8x64xf32>
    %6 = arith.addf %3, %5 : vector<8x64xf32>
    %cst_6 = arith.constant 5.000000e-01 : f32
    %7 = vector.broadcast %cst_6 : f32 to vector<8x64xf32>
    %8 = arith.mulf %7, %6 : vector<8x64xf32>
    %cst_7 = arith.constant 0.707106769 : f32
    %9 = vector.broadcast %cst_7 : f32 to vector<8x64xf32>
    %10 = arith.mulf %6, %9 : vector<8x64xf32>
    %cst_8 = arith.constant 0.000000e+00 : f32
    %11 = vector.broadcast %cst_8 : f32 to vector<8x64xf32>
    %12 = arith.cmpf oge, %10, %11 : vector<8x64xf32>
    %cst_9 = arith.constant 1.000000e+00 : f32
    %cst_10 = arith.constant -1.000000e+00 : f32
    %13 = vector.broadcast %cst_9 : f32 to vector<8x64xf32>
    %14 = vector.broadcast %cst_10 : f32 to vector<8x64xf32>
    %15 = arith.select %12, %13, %14 : vector<8x64xi1>, vector<8x64xf32>
    %16 = math.absf %10 : vector<8x64xf32>
    %cst_11 = arith.constant 0.327591091 : f32
    %17 = vector.broadcast %cst_11 : f32 to vector<8x64xf32>
    %18 = arith.mulf %17, %16 : vector<8x64xf32>
    %cst_12 = arith.constant 1.000000e+00 : f32
    %19 = vector.broadcast %cst_12 : f32 to vector<8x64xf32>
    %20 = arith.addf %19, %18 : vector<8x64xf32>
    %cst_13 = arith.constant 1.000000e+00 : f32
    %21 = vector.broadcast %cst_13 : f32 to vector<8x64xf32>
    %22 = arith.divf %21, %20 : vector<8x64xf32>
    %cst_14 = arith.constant 1.06140542 : f32
    %23 = vector.broadcast %cst_14 : f32 to vector<8x64xf32>
    %24 = arith.mulf %23, %22 : vector<8x64xf32>
    %cst_15 = arith.constant -1.45315206 : f32
    %25 = vector.broadcast %cst_15 : f32 to vector<8x64xf32>
    %26 = arith.addf %24, %25 : vector<8x64xf32>
    %27 = arith.mulf %26, %22 : vector<8x64xf32>
    %cst_16 = arith.constant 1.42141378 : f32
    %28 = vector.broadcast %cst_16 : f32 to vector<8x64xf32>
    %29 = arith.addf %27, %28 : vector<8x64xf32>
    %30 = arith.mulf %29, %22 : vector<8x64xf32>
    %cst_17 = arith.constant -0.284496725 : f32
    %31 = vector.broadcast %cst_17 : f32 to vector<8x64xf32>
    %32 = arith.addf %30, %31 : vector<8x64xf32>
    %33 = arith.mulf %32, %22 : vector<8x64xf32>
    %cst_18 = arith.constant 0.254829586 : f32
    %34 = vector.broadcast %cst_18 : f32 to vector<8x64xf32>
    %35 = arith.addf %33, %34 : vector<8x64xf32>
    %36 = arith.mulf %35, %22 : vector<8x64xf32>
    %cst_19 = arith.constant 0.000000e+00 : f32
    %37 = vector.broadcast %cst_19 : f32 to vector<8x64xf32>
    %38 = arith.subf %37, %16 : vector<8x64xf32>
    %39 = arith.mulf %38, %16 : vector<8x64xf32>
    %40 = math.exp %39 : vector<8x64xf32>
    %41 = arith.mulf %36, %40 : vector<8x64xf32>
    %cst_20 = arith.constant 1.000000e+00 : f32
    %42 = vector.broadcast %cst_20 : f32 to vector<8x64xf32>
    %43 = arith.subf %42, %41 : vector<8x64xf32>
    %44 = arith.mulf %15, %43 : vector<8x64xf32>
    %cst_21 = arith.constant 1.000000e+00 : f32
    %45 = vector.broadcast %cst_21 : f32 to vector<8x64xf32>
    %46 = arith.addf %45, %44 : vector<8x64xf32>
    %47 = arith.mulf %8, %46 : vector<8x64xf32>
    %c0_22 = arith.constant 0 : index
    %c0_23 = arith.constant 0 : index
    %48 = vector.load %arg4[%c0_22, %c0_23] : memref<64x32xf32, #tpu.memory_space<vmem>>, vector<64x32xf32>
    %cst_24 = arith.constant dense<0.000000e+00> : vector<8x32xf32>
    %49 = tpu.matmul %47, %48, %cst_24 {dimension_numbers = #tpu.dot_dimension_numbers<[1], [0], [0], [1], [0, 0, 1, 1], [], []>} : vector<8x64xf32>, vector<64x32xf32>, vector<8x32xf32> -> vector<8x32xf32>
    %c0_25 = arith.constant 0 : index
    %c0_26 = arith.constant 0 : index
    %50 = vector.load %arg5[%c0_25, %c0_26] : memref<1x32xf32, #tpu.memory_space<vmem>>, vector<1x32xf32>
    %51 = vector.broadcast %50 : vector<1x32xf32> to vector<8x32xf32>
    %52 = arith.addf %49, %51 : vector<8x32xf32>
    %53 = arith.addf %1, %52 : vector<8x32xf32>
    %c0_27 = arith.constant 0 : index
    %c0_28 = arith.constant 0 : index
    %54 = vector.load %arg6[%c0_27, %c0_28] : memref<1x32xf32, #tpu.memory_space<vmem>>, vector<1x32xf32>
    %c0_29 = arith.constant 0 : index
    %c0_30 = arith.constant 0 : index
    %55 = vector.load %arg7[%c0_29, %c0_30] : memref<1x32xf32, #tpu.memory_space<vmem>>, vector<1x32xf32>
    %cst_31 = arith.constant dense<0.000000e+00> : vector<8xf32>
    %56 = vector.multi_reduction <add>, %53, %cst_31 [1] : vector<8x32xf32> to vector<8xf32>
    %57 = vector.shape_cast %56 : vector<8xf32> to vector<8x1xf32>
    %cst_32 = arith.constant 3.200000e+01 : f32
    %58 = vector.broadcast %cst_32 : f32 to vector<8x1xf32>
    %59 = arith.divf %57, %58 : vector<8x1xf32>
    %60 = vector.broadcast %59 : vector<8x1xf32> to vector<8x32xf32>
    %61 = arith.subf %53, %60 : vector<8x32xf32>
    %62 = arith.mulf %61, %61 : vector<8x32xf32>
    %cst_33 = arith.constant dense<0.000000e+00> : vector<8xf32>
    %63 = vector.multi_reduction <add>, %62, %cst_33 [1] : vector<8x32xf32> to vector<8xf32>
    %64 = vector.shape_cast %63 : vector<8xf32> to vector<8x1xf32>
    %cst_34 = arith.constant 3.200000e+01 : f32
    %65 = vector.broadcast %cst_34 : f32 to vector<8x1xf32>
    %66 = arith.divf %64, %65 : vector<8x1xf32>
    %67 = vector.broadcast %59 : vector<8x1xf32> to vector<8x32xf32>
    %68 = arith.subf %53, %67 : vector<8x32xf32>
    %cst_35 = arith.constant 9.99999974E-6 : f32
    %69 = vector.broadcast %cst_35 : f32 to vector<8x1xf32>
    %70 = arith.addf %66, %69 : vector<8x1xf32>
    %71 = math.rsqrt %70 : vector<8x1xf32>
    %72 = vector.broadcast %71 : vector<8x1xf32> to vector<8x32xf32>
    %73 = arith.mulf %68, %72 : vector<8x32xf32>
    %74 = vector.broadcast %54 : vector<1x32xf32> to vector<8x32xf32>
    %75 = arith.mulf %73, %74 : vector<8x32xf32>
    %76 = vector.broadcast %55 : vector<1x32xf32> to vector<8x32xf32>
    %77 = arith.addf %75, %76 : vector<8x32xf32>
    %cst_36 = arith.constant 0.000000e+00 : f32
    %cst_37 = arith.constant 3.40282347E+38 : f32
    %78 = arith.subf %cst_36, %cst_37 : f32
    %cst_38 = arith.constant 3.40282347E+38 : f32
    %79 = vector.broadcast %78 : f32 to vector<8x32xf32>
    %80 = arith.maximumf %79, %77 : vector<8x32xf32>
    %81 = vector.broadcast %cst_38 : f32 to vector<8x32xf32>
    %82 = arith.minimumf %81, %80 : vector<8x32xf32>
    %c0_39 = arith.constant 0 : index
    %c0_40 = arith.constant 0 : index
    %c0_41 = arith.constant 0 : index
    %83 = vector.load %arg8[%c0_39, %c0_40, %c0_41] : memref<1x8x32xf32, #tpu.memory_space<vmem>>, vector<1x8x32xf32>
    %84 = vector.shape_cast %83 : vector<1x8x32xf32> to vector<8x32xf32>
    %85 = vector.shape_cast %82 : vector<8x32xf32> to vector<1x8x32xf32>
    tpu.vector_store %arg8[%c0_39, %c0_40, %c0_41], %85 {strides = array<i32>} : memref<1x8x32xf32, #tpu.memory_space<vmem>>, vector<1x8x32xf32>,
    return
  }
  func.func @transform_0(%arg0: i32) -> (i32, i32, i32) {
    %c0_i32 = arith.constant 0 : i32
    %c0_i32_0 = arith.constant 0 : i32
    %c0_i32_1 = arith.constant 0 : i32
    return %arg0, %c0_i32, %c0_i32_0 : i32, i32, i32
  }
  func.func @transform_1(%arg0: i32) -> (i32, i32) {
    %c0_i32 = arith.constant 0 : i32
    %c0_i32_0 = arith.constant 0 : i32
    %c0_i32_1 = arith.constant 0 : i32
    return %c0_i32, %c0_i32_0 : i32, i32
  }
  func.func @transform_2(%arg0: i32) -> (i32, i32) {
    %c0_i32 = arith.constant 0 : i32
    %c0_i32_0 = arith.constant 0 : i32
    %c0_i32_1 = arith.constant 0 : i32
    return %c0_i32, %c0_i32_0 : i32, i32
  }
  func.func @transform_3(%arg0: i32) -> (i32, i32) {
    %c0_i32 = arith.constant 0 : i32
    %c0_i32_0 = arith.constant 0 : i32
    %c0_i32_1 = arith.constant 0 : i32
    return %c0_i32, %c0_i32_0 : i32, i32
  }
  func.func @transform_4(%arg0: i32) -> (i32, i32) {
    %c0_i32 = arith.constant 0 : i32
    %c0_i32_0 = arith.constant 0 : i32
    %c0_i32_1 = arith.constant 0 : i32
    return %c0_i32, %c0_i32_0 : i32, i32
  }
  func.func @transform_5(%arg0: i32) -> (i32, i32) {
    %c0_i32 = arith.constant 0 : i32
    %c0_i32_0 = arith.constant 0 : i32
    %c0_i32_1 = arith.constant 0 : i32
    return %c0_i32, %c0_i32_0 : i32, i32
  }
  func.func @transform_6(%arg0: i32) -> (i32, i32) {
    %c0_i32 = arith.constant 0 : i32
    %c0_i32_0 = arith.constant 0 : i32
    %c0_i32_1 = arith.constant 0 : i32
    return %c0_i32, %c0_i32_0 : i32, i32
  }
  func.func @transform_7(%arg0: i32) -> (i32, i32, i32) {
    %c0_i32 = arith.constant 0 : i32
    %c0_i32_0 = arith.constant 0 : i32
    %c0_i32_1 = arith.constant 0 : i32
    return %arg0, %c0_i32, %c0_i32_0 : i32, i32, i32
  }
}

module attributes {stable_mosaic.version = 11 : i64} {
  func.func @_ffn_block_kernel(%arg0: i32, %arg1: memref<1x8x32xf32, #tpu.memory_space<vmem>>, %arg2: memref<32x64xf32, #tpu.memory_space<vmem>>, %arg3: memref<1x64xf32, #tpu.memory_space<vmem>>, %arg4: memref<64x32xf32, #tpu.memory_space<vmem>>, %arg5: memref<1x32xf32, #tpu.memory_space<vmem>>, %arg6: memref<1x32xf32, #tpu.memory_space<vmem>>, %arg7: memref<1x32xf32, #tpu.memory_space<vmem>>, %arg8: memref<1x8x32xf32, #tpu.memory_space<vmem>>) attributes {dimension_semantics = [#tpu.dimension_semantics<parallel>], iteration_bounds = array<i64: 2>, scalar_prefetch = 0 : i64, scratch_operands = 0 : i64, tpu.core_type = #tpu.core_type<tc>, window_params = [{transform_indices = @transform_0, window_bounds = array<i64: 1, 8, 32>}, {pipeline_mode = #tpu.pipeline_mode<synchronous>, transform_indices = @transform_1, window_bounds = array<i64: 32, 64>}, {pipeline_mode = #tpu.pipeline_mode<synchronous>, transform_indices = @transform_2, window_bounds = array<i64: 1, 64>}, {pipeline_mode = #tpu.pipeline_mode<synchronous>, transform_indices = @transform_3, window_bounds = array<i64: 64, 32>}, {pipeline_mode = #tpu.pipeline_mode<synchronous>, transform_indices = @transform_4, window_bounds = array<i64: 1, 32>}, {pipeline_mode = #tpu.pipeline_mode<synchronous>, transform_indices = @transform_5, window_bounds = array<i64: 1, 32>}, {pipeline_mode = #tpu.pipeline_mode<synchronous>, transform_indices = @transform_6, window_bounds = array<i64: 1, 32>}, {transform_indices = @transform_7, window_bounds = array<i64: 1, 8, 32>}]} {
    %c0 = arith.constant 0 : index
    %c0_0 = arith.constant 0 : index
    %c0_1 = arith.constant 0 : index
    %0 = vector.load %arg1[%c0, %c0_0, %c0_1] : memref<1x8x32xf32, #tpu.memory_space<vmem>>, vector<1x8x32xf32>
    %1 = vector.shape_cast %0 : vector<1x8x32xf32> to vector<8x32xf32>
    %c0_2 = arith.constant 0 : index
    %c0_3 = arith.constant 0 : index
    %2 = vector.load %arg2[%c0_2, %c0_3] : memref<32x64xf32, #tpu.memory_space<vmem>>, vector<32x64xf32>
    %cst = arith.constant dense<0.000000e+00> : vector<8x64xf32>
    %3 = tpu.matmul %1, %2, %cst {dimension_numbers = #tpu.dot_dimension_numbers<[1], [0], [0], [1], [0, 0, 1, 1], [], []>} : vector<8x32xf32>, vector<32x64xf32>, vector<8x64xf32> -> vector<8x64xf32>
    %c0_4 = arith.constant 0 : index
    %c0_5 = arith.constant 0 : index
    %4 = vector.load %arg3[%c0_4, %c0_5] : memref<1x64xf32, #tpu.memory_space<vmem>>, vector<1x64xf32>
    %5 = vector.broadcast %4 : vector<1x64xf32> to vector<8x64xf32>
    %6 = arith.addf %3, %5 : vector<8x64xf32>
    %cst_6 = arith.constant 5.000000e-01 : f32
    %7 = vector.broadcast %cst_6 : f32 to vector<8x64xf32>
    %8 = arith.mulf %7, %6 : vector<8x64xf32>
    %cst_7 = arith.constant 0.707106769 : f32
    %9 = vector.broadcast %cst_7 : f32 to vector<8x64xf32>
    %10 = arith.mulf %6, %9 : vector<8x64xf32>
    %cst_8 = arith.constant 0.000000e+00 : f32
    %11 = vector.broadcast %cst_8 : f32 to vector<8x64xf32>
    %12 = arith.cmpf oge, %10, %11 : vector<8x64xf32>
    %cst_9 = arith.constant 1.000000e+00 : f32
    %cst_10 = arith.constant -1.000000e+00 : f32
    %13 = vector.broadcast %cst_9 : f32 to vector<8x64xf32>
    %14 = vector.broadcast %cst_10 : f32 to vector<8x64xf32>
    %15 = arith.select %12, %13, %14 : vector<8x64xi1>, vector<8x64xf32>
    %16 = math.absf %10 : vector<8x64xf32>
    %cst_11 = arith.constant 0.327591091 : f32
    %17 = vector.broadcast %cst_11 : f32 to vector<8x64xf32>
    %18 = arith.mulf %17, %16 : vector<8x64xf32>
    %cst_12 = arith.constant 1.000000e+00 : f32
    %19 = vector.broadcast %cst_12 : f32 to vector<8x64xf32>
    %20 = arith.addf %19, %18 : vector<8x64xf32>
    %cst_13 = arith.constant 1.000000e+00 : f32
    %21 = vector.broadcast %cst_13 : f32 to vector<8x64xf32>
    %22 = arith.divf %21, %20 : vector<8x64xf32>
    %cst_14 = arith.constant 1.06140542 : f32
    %23 = vector.broadcast %cst_14 : f32 to vector<8x64xf32>
    %24 = arith.mulf %23, %22 : vector<8x64xf32>
    %cst_15 = arith.constant -1.45315206 : f32
    %25 = vector.broadcast %cst_15 : f32 to vector<8x64xf32>
    %26 = arith.addf %24, %25 : vector<8x64xf32>
    %27 = arith.mulf %26, %22 : vector<8x64xf32>
    %cst_16 = arith.constant 1.42141378 : f32
    %28 = vector.broadcast %cst_16 : f32 to vector<8x64xf32>
    %29 = arith.addf %27, %28 : vector<8x64xf32>
    %30 = arith.mulf %29, %22 : vector<8x64xf32>
    %cst_17 = arith.constant -0.284496725 : f32
    %31 = vector.broadcast %cst_17 : f32 to vector<8x64xf32>
    %32 = arith.addf %30, %31 : vector<8x64xf32>
    %33 = arith.mulf %32, %22 : vector<8x64xf32>
    %cst_18 = arith.constant 0.254829586 : f32
    %34 = vector.broadcast %cst_18 : f32 to vector<8x64xf32>
    %35 = arith.addf %33, %34 : vector<8x64xf32>
    %36 = arith.mulf %35, %22 : vector<8x64xf32>
    %cst_19 = arith.constant 0.000000e+00 : f32
    %37 = vector.broadcast %cst_19 : f32 to vector<8x64xf32>
    %38 = arith.subf %37, %16 : vector<8x64xf32>
    %39 = arith.mulf %38, %16 : vector<8x64xf32>
    %40 = math.exp %39 : vector<8x64xf32>
    %41 = arith.mulf %36, %40 : vector<8x64xf32>
    %cst_20 = arith.constant 1.000000e+00 : f32
    %42 = vector.broadcast %cst_20 : f32 to vector<8x64xf32>
    %43 = arith.subf %42, %41 : vector<8x64xf32>
    %44 = arith.mulf %15, %43 : vector<8x64xf32>
    %cst_21 = arith.constant 1.000000e+00 : f32
    %45 = vector.broadcast %cst_21 : f32 to vector<8x64xf32>
    %46 = arith.addf %45, %44 : vector<8x64xf32>
    %47 = arith.mulf %8, %46 : vector<8x64xf32>
    %c0_22 = arith.constant 0 : index
    %c0_23 = arith.constant 0 : index
    %48 = vector.load %arg4[%c0_22, %c0_23] : memref<64x32xf32, #tpu.memory_space<vmem>>, vector<64x32xf32>
    %cst_24 = arith.constant dense<0.000000e+00> : vector<8x32xf32>
    %49 = tpu.matmul %47, %48, %cst_24 {dimension_numbers = #tpu.dot_dimension_numbers<[1], [0], [0], [1], [0, 0, 1, 1], [], []>} : vector<8x64xf32>, vector<64x32xf32>, vector<8x32xf32> -> vector<8x32xf32>
    %c0_25 = arith.constant 0 : index
    %c0_26 = arith.constant 0 : index
    %50 = vector.load %arg5[%c0_25, %c0_26] : memref<1x32xf32, #tpu.memory_space<vmem>>, vector<1x32xf32>
    %51 = vector.broadcast %50 : vector<1x32xf32> to vector<8x32xf32>
    %52 = arith.addf %49, %51 : vector<8x32xf32>
    %53 = arith.addf %1, %52 : vector<8x32xf32>
    %c0_27 = arith.constant 0 : index
    %c0_28 = arith.constant 0 : index
    %54 = vector.load %arg6[%c0_27, %c0_28] : memref<1x32xf32, #tpu.memory_space<vmem>>, vector<1x32xf32>
    %c0_29 = arith.constant 0 : index
    %c0_30 = arith.constant 0 : index
    %55 = vector.load %arg7[%c0_29, %c0_30] : memref<1x32xf32, #tpu.memory_space<vmem>>, vector<1x32xf32>
    %cst_31 = arith.constant dense<0.000000e+00> : vector<8xf32>
    %56 = vector.multi_reduction <add>, %53, %cst_31 [1] : vector<8x32xf32> to vector<8xf32>
    %57 = vector.shape_cast %56 : vector<8xf32> to vector<8x1xf32>
    %cst_32 = arith.constant 3.200000e+01 : f32
    %58 = vector.broadcast %cst_32 : f32 to vector<8x1xf32>
    %59 = arith.divf %57, %58 : vector<8x1xf32>
    %60 = vector.broadcast %59 : vector<8x1xf32> to vector<8x32xf32>
    %61 = arith.subf %53, %60 : vector<8x32xf32>
    %62 = arith.mulf %61, %61 : vector<8x32xf32>
    %cst_33 = arith.constant dense<0.000000e+00> : vector<8xf32>
    %63 = vector.multi_reduction <add>, %62, %cst_33 [1] : vector<8x32xf32> to vector<8xf32>
    %64 = vector.shape_cast %63 : vector<8xf32> to vector<8x1xf32>
    %cst_34 = arith.constant 3.200000e+01 : f32
    %65 = vector.broadcast %cst_34 : f32 to vector<8x1xf32>
    %66 = arith.divf %64, %65 : vector<8x1xf32>
    %67 = vector.broadcast %59 : vector<8x1xf32> to vector<8x32xf32>
    %68 = arith.subf %53, %67 : vector<8x32xf32>
    %cst_35 = arith.constant 9.99999974E-6 : f32
    %69 = vector.broadcast %cst_35 : f32 to vector<8x1xf32>
    %70 = arith.addf %66, %69 : vector<8x1xf32>
    %71 = math.rsqrt %70 : vector<8x1xf32>
    %72 = vector.broadcast %71 : vector<8x1xf32> to vector<8x32xf32>
    %73 = arith.mulf %68, %72 : vector<8x32xf32>
    %74 = vector.broadcast %54 : vector<1x32xf32> to vector<8x32xf32>
    %75 = arith.mulf %73, %74 : vector<8x32xf32>
    %76 = vector.broadcast %55 : vector<1x32xf32> to vector<8x32xf32>
    %77 = arith.addf %75, %76 : vector<8x32xf32>
    %cst_36 = arith.constant 0.000000e+00 : f32
    %cst_37 = arith.constant 3.40282347E+38 : f32
    %78 = arith.subf %cst_36, %cst_37 : f32
    %cst_38 = arith.constant 3.40282347E+38 : f32
    %79 = vector.broadcast %78 : f32 to vector<8x32xf32>
    %80 = arith.maximumf %79, %77 : vector<8x32xf32>
    %81 = vector.broadcast %cst_38 : f32 to vector<8x32xf32>
    %82 = arith.minimumf %81, %80 : vector<8x32xf32>
    %c0_39 = arith.constant 0 : index
    %c0_40 = arith.constant 0 : index
    %c0_41 = arith.constant 0 : index
    %83 = vector.load %arg8[%c0_39, %c0_40, %c0_41] : memref<1x8x32xf32, #tpu.memory_space<vmem>>, vector<1x8x32xf32>
    %84 = vector.shape_cast %83 : vector<1x8x32xf32> to vector<8x32xf32>
    %85 = vector.shape_cast %82 : vector<8x32xf32> to vector<1x8x32xf32>
    tpu.vector_store %arg8[%c0_39, %c0_40, %c0_41], %85 {strides = array<i32>} : memref<1x8x32xf32, #tpu.memory_space<vmem>>, vector<1x8x32xf32>,
    return
  }
  func.func @transform_0(%arg0: i32) -> (i32, i32, i32) {
    %c0_i32 = arith.constant 0 : i32
    %c0_i32_0 = arith.constant 0 : i32
    %c0_i32_1 = arith.constant 0 : i32
    return %arg0, %c0_i32, %c0_i32_0 : i32, i32, i32
  }
  func.func @transform_1(%arg0: i32) -> (i32, i32) {
    %c0_i32 = arith.constant 0 : i32
    %c0_i32_0 = arith.constant 0 : i32
    %c0_i32_1 = arith.constant 0 : i32
    return %c0_i32, %c0_i32_0 : i32, i32
  }
  func.func @transform_2(%arg0: i32) -> (i32, i32) {
    %c0_i32 = arith.constant 0 : i32
    %c0_i32_0 = arith.constant 0 : i32
    %c0_i32_1 = arith.constant 0 : i32
    return %c0_i32, %c0_i32_0 : i32, i32
  }
  func.func @transform_3(%arg0: i32) -> (i32, i32) {
    %c0_i32 = arith.constant 0 : i32
    %c0_i32_0 = arith.constant 0 : i32
    %c0_i32_1 = arith.constant 0 : i32
    return %c0_i32, %c0_i32_0 : i32, i32
  }
  func.func @transform_4(%arg0: i32) -> (i32, i32) {
    %c0_i32 = arith.constant 0 : i32
    %c0_i32_0 = arith.constant 0 : i32
    %c0_i32_1 = arith.constant 0 : i32
    return %c0_i32, %c0_i32_0 : i32, i32
  }
  func.func @transform_5(%arg0: i32) -> (i32, i32) {
    %c0_i32 = arith.constant 0 : i32
    %c0_i32_0 = arith.constant 0 : i32
    %c0_i32_1 = arith.constant 0 : i32
    return %c0_i32, %c0_i32_0 : i32, i32
  }
  func.func @transform_6(%arg0: i32) -> (i32, i32) {
    %c0_i32 = arith.constant 0 : i32
    %c0_i32_0 = arith.constant 0 : i32
    %c0_i32_1 = arith.constant 0 : i32
    return %c0_i32, %c0_i32_0 : i32, i32
  }
  func.func @transform_7(%arg0: i32) -> (i32, i32, i32) {
    %c0_i32 = arith.constant 0 : i32
    %c0_i32_0 = arith.constant 0 : i32
    %c0_i32_1 = arith.constant 0 : i32
    return %arg0, %c0_i32, %c0_i32_0 : i32, i32, i32
  }
}

</mosaic_0001>

<llo_original>
// kernel: bart_encoder_forward.5
$region0: #{bart_encoder_forward.5}
  #allocation0 [shape = 'u32[]', space=smem, size = 0x4, offset = 0x4, fixed_abs, tag = 'smem constant byte address 0x4 - core index']
  #allocation1 [shape = 'u32[72,128]{1,0:T(1,128)}', space=vmem, size = 0x9000, scoped, tag = 'internal scratch']
  %s0 = inlined_call_operand.vmem [shape: f32[2,8,32], index: 0, kind: input, shape index: {}]
  %s1 = inlined_call_operand.vmem [shape: f32[1,8,32], index: 1, kind: input, shape index: {}]
  %s2 = inlined_call_operand.vmem [shape: f32[1,32], index: 2, kind: input, shape index: {}]
  %s3 = inlined_call_operand.vmem [shape: f32[1,32], index: 3, kind: input, shape index: {}]
  %s4 = inlined_call_operand.vmem [shape: f32[2,8,32], index: 4, kind: output, shape index: {}]
  %s5 = sld [smem:[#allocation0]]
  $region49: #{bart_encoder_forward.5} parent=0
    _
  %s7 = ssub.s32 1, %s5
  %s8 = scalar_select 0, %s7, %s5
  loop: start=0, step=1, limit=4
  $region2: #{bart_encoder_forward.5} parent=0 // loop_pre_header
    _
  $region3: #{bart_encoder_forward.5} parent=0 // loop_header
    %s10 = sphi 0, %s14
    %p11 = scmp.ge.s32.totalorder %s10, 4
    %s20 = sphi 0, %s22
    %s23 = sphi 0, %s20
    %s24 = sphi 0, %s23
    %s40 = sphi 0, %s24
    %s44 = sphi 0, %s44
    %s46 = sphi 0, %s44
    %s47 = sphi 0, %s46
    %s61 = sphi 0, %s47
    %s65 = sphi 0, %s65
    %s67 = sphi 0, %s65
    %s68 = sphi 0, %s67
    %s82 = sphi 0, %s68
    %s86 = sphi 0, %s86
    %s88 = sphi 0, %s86
    %s89 = sphi 0, %s88
    %s103 = sphi 0, %s89
    %s109 = sphi 0, %s111
    %s112 = sphi 0, %s109
    %s113 = sphi 0, %s112
    %s129 = sphi 0, %s113
  $region4: #{bart_encoder_forward.5} parent=0 // loop_header_branch
    %13 = sbr.rel (%p11) target = $region8
  $region5: #{bart_encoder_forward.5} parent=0 // loop_body
    %s15 = ssub.s32 %s10, 1
    %s16 = ssub.s32 %s10, 2
    %s17 = sadd.s32 %s10, 1
    %s18 = ssub.s32 %s10, %s17
    %p19 = scmp.eq.s32.totalorder %s18, 0
    %s21 = sadd.s32 %s20, 1
    %s22 = scalar_select %p19, %s20, %s21
    %p25 = pneg %p19
    %p26 = scmp.eq.s32.totalorder %s10, 1
    %p27 = por %p25, %p26
    %p28 = scmp.ne.s32.totalorder %s20, %s23
    %p29 = scmp.eq.s32.totalorder %s10, 0
    %p30 = por %p28, %p29
    %p31 = scmp.ne.s32.totalorder %s20, %s23
    %p32 = scmp.eq.s32.totalorder %s15, 1
    %p33 = por %p31, %p32
    %p34 = scmp.ne.s32.totalorder %s23, %s24
    %p35 = scmp.eq.s32.totalorder %s15, 0
    %p36 = por %p34, %p35
    %p37 = scmp.ne.s32.totalorder %s23, %s24
    %p38 = scmp.eq.s32.totalorder %s16, 1
    %p39 = por %p37, %p38
    %p41 = scmp.ne.s32.totalorder %s24, %s40
    %p42 = scmp.eq.s32.totalorder %s16, 0
    %p43 = por %p41, %p42
    %s45 = sadd.s32 %s44, 1
    %p48 = scmp.eq.s32.totalorder %s10, 1
    %p49 = scmp.ne.s32.totalorder %s44, %s46
    %p50 = scmp.eq.s32.totalorder %s10, 0
    %p51 = por %p49, %p50
    %p52 = scmp.ne.s32.totalorder %s44, %s46
    %p53 = scmp.eq.s32.totalorder %s15, 1
    %p54 = por %p52, %p53
    %p55 = scmp.ne.s32.totalorder %s46, %s47
    %p56 = scmp.eq.s32.totalorder %s15, 0
    %p57 = por %p55, %p56
    %p58 = scmp.ne.s32.totalorder %s46, %s47
    %p59 = scmp.eq.s32.totalorder %s16, 1
    %p60 = por %p58, %p59
    %p62 = scmp.ne.s32.totalorder %s47, %s61
    %p63 = scmp.eq.s32.totalorder %s16, 0
    %p64 = por %p62, %p63
    %s66 = sadd.s32 %s65, 1
    %p69 = scmp.eq.s32.totalorder %s10, 1
    %p70 = scmp.ne.s32.totalorder %s65, %s67
    %p71 = scmp.eq.s32.totalorder %s10, 0
    %p72 = por %p70, %p71
    %p73 = scmp.ne.s32.totalorder %s65, %s67
    %p74 = scmp.eq.s32.totalorder %s15, 1
    %p75 = por %p73, %p74
    %p76 = scmp.ne.s32.totalorder %s67, %s68
    %p77 = scmp.eq.s32.totalorder %s15, 0
    %p78 = por %p76, %p77
    %p79 = scmp.ne.s32.totalorder %s67, %s68
    %p80 = scmp.eq.s32.totalorder %s16, 1
    %p81 = por %p79, %p80
    %p83 = scmp.ne.s32.totalorder %s68, %s82
    %p84 = scmp.eq.s32.totalorder %s16, 0
    %p85 = por %p83, %p84
    %s87 = sadd.s32 %s86, 1
    %p90 = scmp.eq.s32.totalorder %s10, 1
    %p91 = scmp.ne.s32.totalorder %s86, %s88
    %p92 = scmp.eq.s32.totalorder %s10, 0
    %p93 = por %p91, %p92
    %p94 = scmp.ne.s32.totalorder %s86, %s88
    %p95 = scmp.eq.s32.totalorder %s15, 1
    %p96 = por %p94, %p95
    %p97 = scmp.ne.s32.totalorder %s88, %s89
    %p98 = scmp.eq.s32.totalorder %s15, 0
    %p99 = por %p97, %p98
    %p100 = scmp.ne.s32.totalorder %s88, %s89
    %p101 = scmp.eq.s32.totalorder %s16, 1
    %p102 = por %p100, %p101
    %p104 = scmp.ne.s32.totalorder %s89, %s103
    %p105 = scmp.eq.s32.totalorder %s16, 0
    %p106 = por %p104, %p105
    %s107 = ssub.s32 %s10, %s17
    %p108 = scmp.eq.s32.totalorder %s107, 0
    %s110 = sadd.s32 %s109, 1
    %s111 = scalar_select %p108, %s109, %s110
    %p114 = pneg %p108
    %p115 = scmp.eq.s32.totalorder %s10, 1
    %p116 = por %p114, %p115
    %p117 = scmp.ne.s32.totalorder %s109, %s112
    %p118 = scmp.eq.s32.totalorder %s10, 0
    %p119 = por %p117, %p118
    %p120 = scmp.ne.s32.totalorder %s109, %s112
    %p121 = scmp.eq.s32.totalorder %s15, 1
    %p122 = por %p120, %p121
    %p123 = scmp.ne.s32.totalorder %s112, %s113
    %p124 = scmp.eq.s32.totalorder %s15, 0
    %p125 = por %p123, %p124
    %p126 = scmp.ne.s32.totalorder %s112, %s113
    %p127 = scmp.eq.s32.totalorder %s16, 1
    %p128 = por %p126, %p127
    %p130 = scmp.ne.s32.totalorder %s113, %s129
    %p131 = scmp.eq.s32.totalorder %s16, 0
    %p132 = por %p130, %p131
    %p133 = scmp.le.s32.totalorder 1, %s10
    %p134 = scmp.lt.s32.totalorder %s10, 3
    %p135 = pnand %p133, %p134
    %p136 = pneg %p135
    // Predicated region
    $region9: #{bart_encoder_forward.5} parent=5 // pred_check
      _
    $region10: #{bart_encoder_forward.5} parent=5 // pred_check_branch
      %138 = sbr.rel (%p135) target = $region12
    $region11: #{bart_encoder_forward.5} parent=5 // pred_region
      %s139 = ssub.s32 %s10, 1
      // Predicated region
      $region13: #{bart_encoder_forward.5} parent=11 // pred_check
        %p140 = pneg %p57
      $region14: #{bart_encoder_forward.5} parent=11 // pred_check_branch
        %142 = sbr.rel (%p140) target = $region16
      $region15: #{bart_encoder_forward.5} parent=11 // pred_region
        _
      $region16: #{bart_encoder_forward.5} parent=11 // pred_fallthru
        _
      // Predicated region
      $region17: #{bart_encoder_forward.5} parent=11 // pred_check
        %p143 = pneg %p78
      $region18: #{bart_encoder_forward.5} parent=11 // pred_check_branch
        %145 = sbr.rel (%p143) target = $region20
      $region19: #{bart_encoder_forward.5} parent=11 // pred_region
        _
      $region20: #{bart_encoder_forward.5} parent=11 // pred_fallthru
        _
      // Predicated region
      $region21: #{bart_encoder_forward.5} parent=11 // pred_check
        %p146 = pneg %p99
      $region22: #{bart_encoder_forward.5} parent=11 // pred_check_branch
        %148 = sbr.rel (%p146) target = $region24
      $region23: #{bart_encoder_forward.5} parent=11 // pred_region
        _
      $region24: #{bart_encoder_forward.5} parent=11 // pred_fallthru
        _
    $region12: #{bart_encoder_forward.5} parent=5 // pred_fallthru
      _
    %p149 = scmp.lt.s32.totalorder %s10, 2
    // Predicated region
    $region25: #{bart_encoder_forward.5} parent=5 // pred_check
      %p150 = pneg %p149
    $region26: #{bart_encoder_forward.5} parent=5 // pred_check_branch
      %152 = sbr.rel (%p150) target = $region28
    $region27: #{bart_encoder_forward.5} parent=5 // pred_region
      // Predicated region
      $region29: #{bart_encoder_forward.5} parent=27 // pred_check
        %p153 = pneg %p30
      $region30: #{bart_encoder_forward.5} parent=27 // pred_check_branch
        %155 = sbr.rel (%p153) target = $region32
      $region31: #{bart_encoder_forward.5} parent=27 // pred_region
        %p156 = scmp.lt.s32.totalorder %s10, 1
        %s157 = scalar_select %p156, %s10, 1
        %s158 = smul.addr %s157, 8
        %s159 = scalar_lea.vmem %s0, %s158
      $region32: #{bart_encoder_forward.5} parent=27 // pred_fallthru
        _
    $region28: #{bart_encoder_forward.5} parent=5 // pred_fallthru
      _
    %p160 = scmp.le.s32.totalorder 1, %s10
    %p161 = scmp.lt.s32.totalorder %s10, 3
    %p162 = pnand %p160, %p161
    %p163 = pneg %p162
    // Predicated region
    $region33: #{bart_encoder_forward.5} parent=5 // pred_check
      _
    $region34: #{bart_encoder_forward.5} parent=5 // pred_check_branch
      %165 = sbr.rel (%p162) target = $region36
    $region35: #{bart_encoder_forward.5} parent=5 // pred_region
      %s166 = ssub.s32 %s10, 1
      %p167 = scmp.lt.s32.totalorder %s15, 1
      %s168 = scalar_select %p167, %s15, 1
      %s169 = smul.addr %s168, 8
      %s170 = scalar_lea.vmem %s0, %s169
      %p171 = pneg %p36
      %p172 = pneg %p33
      %p173 = pneg %p57
      %p174 = pneg %p54
      %p175 = pneg %p78
      %p176 = pneg %p75
      %p177 = pneg %p99
      %p178 = pneg %p96
      %p179 = pneg %p125
      %p180 = pneg %p122
      %p181 = scmp.lt.s32.totalorder %s15, 1
      %s182 = scalar_select %p181, %s15, 1
      %s183 = smul.addr %s182, 8
      %s184 = scalar_lea.vmem %s4, %s183
      %p185 = scmp.lt.s32.totalorder %s15, 1
      %s186 = scalar_select %p185, %s15, 1
      %s187 = smul.addr %s186, 8
      %s188 = scalar_lea.vmem %s0, %s187
      %p189 = scmp.lt.s32.totalorder %s15, 1
      %s190 = scalar_select %p189, %s15, 1
      %s191 = smul.addr %s190, 8
      %s192 = scalar_lea.vmem %s4, %s191
      %v193 = vld [vmem:[%s188] sm:$0xff]
      %v194 = vld [vmem:[%s1] sm:$0xff]
      %v195 = vadd.f32 %v193, %v194
      %v196 = vld [vmem:[%s2] sm:$0x1]
      %v197 = vld [vmem:[%s3] sm:$0x1]
      %vm198 = vcmask 261120
      %v199 = vsel %vm198, %v195, 0.0
      %200 = vadd.xlane.f32.xlu0 %v199
      %v201 = vpop.xlane.xlu0 %200
      %v202 = vrcp.pop 32.0
      %v203 = vmul.f32 32.0, %v202
      %v204 = vsub.f32 1.0, %v203
      %v205 = vmul.f32 %v202, %v204
      %v206 = vadd.f32 %v202, %v205
      %vm207 = vweird.f32 %v202
      %v208 = vsel %vm207, %v202, %v206
      %v209 = vmul.f32 %v201, %v208
      %v210 = vsub.f32 %v195, %v209
      %v211 = vmul.f32 %v210, %v210
      %v212 = vsel %vm198, %v211, 0.0
      %213 = vadd.xlane.f32.xlu0 %v212
      %v214 = vpop.xlane.xlu0 %213
      %v215 = vmul.f32 %v214, %v208
      %v216 = vadd.f32 %v215, 1e-05
      %v217 = vrsqrt.pop %v216
      %v218 = vmul.f32 %v217, %v216
      %v219 = vmul.f32 %v218, %v217
      %v220 = vmul.f32 0.5, %v219
      %v221 = vsub.f32 1.5, %v220
      %v222 = vmul.f32 %v217, %v221
      %vm223 = vweird.f32 %v216
      %vm224 = vweird.f32 %v217
      %vm225 = vmor %vm223, %vm224
      %v226 = vsel %vm225, %v217, %v222
      %v227 = vmul.f32 %v210, %v226
      %v229 = vperm.slane %v196, 0
      %v231 = vmul.f32 %v227, %v229
      %v233 = vperm.slane %v197, 0
      %v235 = vadd.f32 %v231, %v233
      %236 = vst.msk [vmem:[%s192] sm:$0xff] %vm198, %v235
      %p237 = scmp.lt.s32.totalorder %s15, 1
      %s238 = scalar_select %p237, %s15, 1
      %s239 = smul.addr %s238, 8
      %s240 = scalar_lea.vmem %s4, %s239
      // Predicated region
      $region37: #{bart_encoder_forward.5} parent=35 // pred_check
        %p241 = pneg %p122
      $region38: #{bart_encoder_forward.5} parent=35 // pred_check_branch
        %243 = sbr.rel (%p241) target = $region40
      $region39: #{bart_encoder_forward.5} parent=35 // pred_region
        _
      $region40: #{bart_encoder_forward.5} parent=35 // pred_fallthru
        _
    $region36: #{bart_encoder_forward.5} parent=5 // pred_fallthru
      _
    %p244 = scmp.le.s32.totalorder 2, %s10
    // Predicated region
    $region41: #{bart_encoder_forward.5} parent=5 // pred_check
      %p245 = pneg %p244
    $region42: #{bart_encoder_forward.5} parent=5 // pred_check_branch
      %247 = sbr.rel (%p245) target = $region44
    $region43: #{bart_encoder_forward.5} parent=5 // pred_region
      %s248 = ssub.s32 %s10, 2
      // Predicated region
      $region45: #{bart_encoder_forward.5} parent=43 // pred_check
        %p249 = pneg %p128
      $region46: #{bart_encoder_forward.5} parent=43 // pred_check_branch
        %251 = sbr.rel (%p249) target = $region48
      $region47: #{bart_encoder_forward.5} parent=43 // pred_region
        %p252 = scmp.lt.s32.totalorder %s16, 1
        %s253 = scalar_select %p252, %s16, 1
        %s254 = smul.addr %s253, 8
        %s255 = scalar_lea.vmem %s4, %s254
      $region48: #{bart_encoder_forward.5} parent=43 // pred_fallthru
        _
    $region44: #{bart_encoder_forward.5} parent=5 // pred_fallthru
      _
  $region6: #{bart_encoder_forward.5} parent=0 // loop_footer
    %s14 = sadd.s32 1, %s10
  $region7: #{bart_encoder_forward.5} parent=0 // loop_footer_branch
    %9 = sbr.rel target = $region3
  $region8: #{bart_encoder_forward.5} parent=0 // loop_exit
    _

// kernel: bart_encoder_forward.9
$region0: #{bart_encoder_forward.9}
  #allocation0 [shape = 'u32[]', space=smem, size = 0x4, offset = 0x4, fixed_abs, tag = 'smem constant byte address 0x4 - core index']
  #allocation1 [shape = 'u32[72,128]{1,0:T(1,128)}', space=vmem, size = 0x9000, scoped, tag = 'internal scratch']
  %s0 = inlined_call_operand.vmem [shape: f32[2,8,32], index: 0, kind: input, shape index: {}]
  %s1 = inlined_call_operand.vmem [shape: f32[32,64], index: 1, kind: input, shape index: {}]
  %s2 = inlined_call_operand.vmem [shape: f32[1,64], index: 2, kind: input, shape index: {}]
  %s3 = inlined_call_operand.vmem [shape: f32[64,32], index: 3, kind: input, shape index: {}]
  %s4 = inlined_call_operand.vmem [shape: f32[1,32], index: 4, kind: input, shape index: {}]
  %s5 = inlined_call_operand.vmem [shape: f32[1,32], index: 5, kind: input, shape index: {}]
  %s6 = inlined_call_operand.vmem [shape: f32[1,32], index: 6, kind: input, shape index: {}]
  %s7 = inlined_call_operand.hbm [shape: f32[2,8,32], index: 7, kind: output, shape index: {}]
  %s8 = sld [smem:[#allocation0]]
  $region61: #{bart_encoder_forward.9} parent=0
    _
  %s10 = ssub.s32 1, %s8
  %s11 = scalar_select 0, %s10, %s8
  $region1: #{bart_encoder_forward.9} parent=0
    #allocation2 [shape = 'u8[8192]{0}', space=vmem, size = 0x2000, scoped, tag = 'output window, operand 0']
    #allocation3 [shape = 's32[2]{0}', space=sflag, size = 0x8, scoped, tag = 'scoped memory for bart_encoder_forward.9']
    %12 = vsyncpa [#allocation3], 0
    %s13 = scalar_lea.sflag [#allocation3], 1
    %14 = vsyncpa %s13, 0
    loop: start=0, step=1, limit=4
    $region2: #{bart_encoder_forward.9} parent=1 // loop_pre_header
      _
    $region3: #{bart_encoder_forward.9} parent=1 // loop_header
      %s16 = sphi 0, %s20
      %p17 = scmp.ge.s32.totalorder %s16, 4
      %s26 = sphi 0, %s28
      %s29 = sphi 0, %s26
      %s30 = sphi 0, %s29
      %s46 = sphi 0, %s30
      %s50 = sphi 0, %s50
      %s52 = sphi 0, %s50
      %s53 = sphi 0, %s52
      %s67 = sphi 0, %s53
      %s71 = sphi 0, %s71
      %s73 = sphi 0, %s71
      %s74 = sphi 0, %s73
      %s88 = sphi 0, %s74
      %s92 = sphi 0, %s92
      %s94 = sphi 0, %s92
      %s95 = sphi 0, %s94
      %s109 = sphi 0, %s95
      %s113 = sphi 0, %s113
      %s115 = sphi 0, %s113
      %s116 = sphi 0, %s115
      %s130 = sphi 0, %s116
      %s134 = sphi 0, %s134
      %s136 = sphi 0, %s134
      %s137 = sphi 0, %s136
      %s151 = sphi 0, %s137
      %s155 = sphi 0, %s155
      %s157 = sphi 0, %s155
      %s158 = sphi 0, %s157
      %s172 = sphi 0, %s158
      %s178 = sphi 0, %s180
      %s181 = sphi 0, %s178
      %s182 = sphi 0, %s181
      %s198 = sphi 0, %s182
    $region4: #{bart_encoder_forward.9} parent=1 // loop_header_branch
      %19 = sbr.rel (%p17) target = $region8
    $region5: #{bart_encoder_forward.9} parent=1 // loop_body
      %s21 = ssub.s32 %s16, 1
      %s22 = ssub.s32 %s16, 2
      %s23 = sadd.s32 %s16, 1
      %s24 = ssub.s32 %s16, %s23
      %p25 = scmp.eq.s32.totalorder %s24, 0
      %s27 = sadd.s32 %s26, 1
      %s28 = scalar_select %p25, %s26, %s27
      %p31 = pneg %p25
      %p32 = scmp.eq.s32.totalorder %s16, 1
      %p33 = por %p31, %p32
      %p34 = scmp.ne.s32.totalorder %s26, %s29
      %p35 = scmp.eq.s32.totalorder %s16, 0
      %p36 = por %p34, %p35
      %p37 = scmp.ne.s32.totalorder %s26, %s29
      %p38 = scmp.eq.s32.totalorder %s21, 1
      %p39 = por %p37, %p38
      %p40 = scmp.ne.s32.totalorder %s29, %s30
      %p41 = scmp.eq.s32.totalorder %s21, 0
      %p42 = por %p40, %p41
      %p43 = scmp.ne.s32.totalorder %s29, %s30
      %p44 = scmp.eq.s32.totalorder %s22, 1
      %p45 = por %p43, %p44
      %p47 = scmp.ne.s32.totalorder %s30, %s46
      %p48 = scmp.eq.s32.totalorder %s22, 0
      %p49 = por %p47, %p48
      %s51 = sadd.s32 %s50, 1
      %p54 = scmp.eq.s32.totalorder %s16, 1
      %p55 = scmp.ne.s32.totalorder %s50, %s52
      %p56 = scmp.eq.s32.totalorder %s16, 0
      %p57 = por %p55, %p56
      %p58 = scmp.ne.s32.totalorder %s50, %s52
      %p59 = scmp.eq.s32.totalorder %s21, 1
      %p60 = por %p58, %p59
      %p61 = scmp.ne.s32.totalorder %s52, %s53
      %p62 = scmp.eq.s32.totalorder %s21, 0
      %p63 = por %p61, %p62
      %p64 = scmp.ne.s32.totalorder %s52, %s53
      %p65 = scmp.eq.s32.totalorder %s22, 1
      %p66 = por %p64, %p65
      %p68 = scmp.ne.s32.totalorder %s53, %s67
      %p69 = scmp.eq.s32.totalorder %s22, 0
      %p70 = por %p68, %p69
      %s72 = sadd.s32 %s71, 1
      %p75 = scmp.eq.s32.totalorder %s16, 1
      %p76 = scmp.ne.s32.totalorder %s71, %s73
      %p77 = scmp.eq.s32.totalorder %s16, 0
      %p78 = por %p76, %p77
      %p79 = scmp.ne.s32.totalorder %s71, %s73
      %p80 = scmp.eq.s32.totalorder %s21, 1
      %p81 = por %p79, %p80
      %p82 = scmp.ne.s32.totalorder %s73, %s74
      %p83 = scmp.eq.s32.totalorder %s21, 0
      %p84 = por %p82, %p83
      %p85 = scmp.ne.s32.totalorder %s73, %s74
      %p86 = scmp.eq.s32.totalorder %s22, 1
      %p87 = por %p85, %p86
      %p89 = scmp.ne.s32.totalorder %s74, %s88
      %p90 = scmp.eq.s32.totalorder %s22, 0
      %p91 = por %p89, %p90
      %s93 = sadd.s32 %s92, 1
      %p96 = scmp.eq.s32.totalorder %s16, 1
      %p97 = scmp.ne.s32.totalorder %s92, %s94
      %p98 = scmp.eq.s32.totalorder %s16, 0
      %p99 = por %p97, %p98
      %p100 = scmp.ne.s32.totalorder %s92, %s94
      %p101 = scmp.eq.s32.totalorder %s21, 1
      %p102 = por %p100, %p101
      %p103 = scmp.ne.s32.totalorder %s94, %s95
      %p104 = scmp.eq.s32.totalorder %s21, 0
      %p105 = por %p103, %p104
      %p106 = scmp.ne.s32.totalorder %s94, %s95
      %p107 = scmp.eq.s32.totalorder %s22, 1
      %p108 = por %p106, %p107
      %p110 = scmp.ne.s32.totalorder %s95, %s109
      %p111 = scmp.eq.s32.totalorder %s22, 0
      %p112 = por %p110, %p111
      %s114 = sadd.s32 %s113, 1
      %p117 = scmp.eq.s32.totalorder %s16, 1
      %p118 = scmp.ne.s32.totalorder %s113, %s115
      %p119 = scmp.eq.s32.totalorder %s16, 0
      %p120 = por %p118, %p119
      %p121 = scmp.ne.s32.totalorder %s113, %s115
      %p122 = scmp.eq.s32.totalorder %s21, 1
      %p123 = por %p121, %p122
      %p124 = scmp.ne.s32.totalorder %s115, %s116
      %p125 = scmp.eq.s32.totalorder %s21, 0
      %p126 = por %p124, %p125
      %p127 = scmp.ne.s32.totalorder %s115, %s116
      %p128 = scmp.eq.s32.totalorder %s22, 1
      %p129 = por %p127, %p128
      %p131 = scmp.ne.s32.totalorder %s116, %s130
      %p132 = scmp.eq.s32.totalorder %s22, 0
      %p133 = por %p131, %p132
      %s135 = sadd.s32 %s134, 1
      %p138 = scmp.eq.s32.totalorder %s16, 1
      %p139 = scmp.ne.s32.totalorder %s134, %s136
      %p140 = scmp.eq.s32.totalorder %s16, 0
      %p141 = por %p139, %p140
      %p142 = scmp.ne.s32.totalorder %s134, %s136
      %p143 = scmp.eq.s32.totalorder %s21, 1
      %p144 = por %p142, %p143
      %p145 = scmp.ne.s32.totalorder %s136, %s137
      %p146 = scmp.eq.s32.totalorder %s21, 0
      %p147 = por %p145, %p146
      %p148 = scmp.ne.s32.totalorder %s136, %s137
      %p149 = scmp.eq.s32.totalorder %s22, 1
      %p150 = por %p148, %p149
      %p152 = scmp.ne.s32.totalorder %s137, %s151
      %p153 = scmp.eq.s32.totalorder %s22, 0
      %p154 = por %p152, %p153
      %s156 = sadd.s32 %s155, 1
      %p159 = scmp.eq.s32.totalorder %s16, 1
      %p160 = scmp.ne.s32.totalorder %s155, %s157
      %p161 = scmp.eq.s32.totalorder %s16, 0
      %p162 = por %p160, %p161
      %p163 = scmp.ne.s32.totalorder %s155, %s157
      %p164 = scmp.eq.s32.totalorder %s21, 1
      %p165 = por %p163, %p164
      %p166 = scmp.ne.s32.totalorder %s157, %s158
      %p167 = scmp.eq.s32.totalorder %s21, 0
      %p168 = por %p166, %p167
      %p169 = scmp.ne.s32.totalorder %s157, %s158
      %p170 = scmp.eq.s32.totalorder %s22, 1
      %p171 = por %p169, %p170
      %p173 = scmp.ne.s32.totalorder %s158, %s172
      %p174 = scmp.eq.s32.totalorder %s22, 0
      %p175 = por %p173, %p174
      %s176 = ssub.s32 %s16, %s23
      %p177 = scmp.eq.s32.totalorder %s176, 0
      %s179 = sadd.s32 %s178, 1
      %s180 = scalar_select %p177, %s178, %s179
      %p183 = pneg %p177
      %p184 = scmp.eq.s32.totalorder %s16, 1
      %p185 = por %p183, %p184
      %p186 = scmp.ne.s32.totalorder %s178, %s181
      %p187 = scmp.eq.s32.totalorder %s16, 0
      %p188 = por %p186, %p187
      %p189 = scmp.ne.s32.totalorder %s178, %s181
      %p190 = scmp.eq.s32.totalorder %s21, 1
      %p191 = por %p189, %p190
      %p192 = scmp.ne.s32.totalorder %s181, %s182
      %p193 = scmp.eq.s32.totalorder %s21, 0
      %p194 = por %p192, %p193
      %p195 = scmp.ne.s32.totalorder %s181, %s182
      %p196 = scmp.eq.s32.totalorder %s22, 1
      %p197 = por %p195, %p196
      %p199 = scmp.ne.s32.totalorder %s182, %s198
      %p200 = scmp.eq.s32.totalorder %s22, 0
      %p201 = por %p199, %p200
      %p202 = scmp.le.s32.totalorder 1, %s16
      %p203 = scmp.lt.s32.totalorder %s16, 3
      %p204 = pnand %p202, %p203
      %p205 = pneg %p204
      // Predicated region
      $region9: #{bart_encoder_forward.9} parent=5 // pred_check
        _
      $region10: #{bart_encoder_forward.9} parent=5 // pred_check_branch
        %207 = sbr.rel (%p204) target = $region12
      $region11: #{bart_encoder_forward.9} parent=5 // pred_region
        %s208 = ssub.s32 %s16, 1
        // Predicated region
        $region13: #{bart_encoder_forward.9} parent=11 // pred_check
          %p209 = pneg %p63
        $region14: #{bart_encoder_forward.9} parent=11 // pred_check_branch
          %211 = sbr.rel (%p209) target = $region16
        $region15: #{bart_encoder_forward.9} parent=11 // pred_region
          _
        $region16: #{bart_encoder_forward.9} parent=11 // pred_fallthru
          _
        // Predicated region
        $region17: #{bart_encoder_forward.9} parent=11 // pred_check
          %p212 = pneg %p84
        $region18: #{bart_encoder_forward.9} parent=11 // pred_check_branch
          %214 = sbr.rel (%p212) target = $region20
        $region19: #{bart_encoder_forward.9} parent=11 // pred_region
          _
        $region20: #{bart_encoder_forward.9} parent=11 // pred_fallthru
          _
        // Predicated region
        $region21: #{bart_encoder_forward.9} parent=11 // pred_check
          %p215 = pneg %p105
        $region22: #{bart_encoder_forward.9} parent=11 // pred_check_branch
          %217 = sbr.rel (%p215) target = $region24
        $region23: #{bart_encoder_forward.9} parent=11 // pred_region
          _
        $region24: #{bart_encoder_forward.9} parent=11 // pred_fallthru
          _
        // Predicated region
        $region25: #{bart_encoder_forward.9} parent=11 // pred_check
          %p218 = pneg %p126
        $region26: #{bart_encoder_forward.9} parent=11 // pred_check_branch
          %220 = sbr.rel (%p218) target = $region28
        $region27: #{bart_encoder_forward.9} parent=11 // pred_region
          _
        $region28: #{bart_encoder_forward.9} parent=11 // pred_fallthru
          _
        // Predicated region
        $region29: #{bart_encoder_forward.9} parent=11 // pred_check
          %p221 = pneg %p147
        $region30: #{bart_encoder_forward.9} parent=11 // pred_check_branch
          %223 = sbr.rel (%p221) target = $region32
        $region31: #{bart_encoder_forward.9} parent=11 // pred_region
          _
        $region32: #{bart_encoder_forward.9} parent=11 // pred_fallthru
          _
        // Predicated region
        $region33: #{bart_encoder_forward.9} parent=11 // pred_check
          %p224 = pneg %p168
        $region34: #{bart_encoder_forward.9} parent=11 // pred_check_branch
          %226 = sbr.rel (%p224) target = $region36
        $region35: #{bart_encoder_forward.9} parent=11 // pred_region
          _
        $region36: #{bart_encoder_forward.9} parent=11 // pred_fallthru
          _
      $region12: #{bart_encoder_forward.9} parent=5 // pred_fallthru
        _
      %p227 = scmp.lt.s32.totalorder %s16, 2
      // Predicated region
      $region37: #{bart_encoder_forward.9} parent=5 // pred_check
        %p228 = pneg %p227
      $region38: #{bart_encoder_forward.9} parent=5 // pred_check_branch
        %230 = sbr.rel (%p228) target = $region40
      $region39: #{bart_encoder_forward.9} parent=5 // pred_region
        // Predicated region
        $region41: #{bart_encoder_forward.9} parent=39 // pred_check
          %p231 = pneg %p36
        $region42: #{bart_encoder_forward.9} parent=39 // pred_check_branch
          %233 = sbr.rel (%p231) target = $region44
        $region43: #{bart_encoder_forward.9} parent=39 // pred_region
          %p234 = scmp.lt.s32.totalorder %s16, 1
          %s235 = scalar_select %p234, %s16, 1
          %s236 = smul.addr %s235, 8
          %s237 = scalar_lea.vmem %s0, %s236
        $region44: #{bart_encoder_forward.9} parent=39 // pred_fallthru
          _
      $region40: #{bart_encoder_forward.9} parent=5 // pred_fallthru
        _
      %p238 = scmp.le.s32.totalorder 1, %s16
      %p239 = scmp.lt.s32.totalorder %s16, 3
      %p240 = pnand %p238, %p239
      %p241 = pneg %p240
      // Predicated region
      $region45: #{bart_encoder_forward.9} parent=5 // pred_check
        _
      $region46: #{bart_encoder_forward.9} parent=5 // pred_check_branch
        %243 = sbr.rel (%p240) target = $region48
      $region47: #{bart_encoder_forward.9} parent=5 // pred_region
        %s244 = ssub.s32 %s16, 1
        %p245 = scmp.lt.s32.totalorder %s21, 1
        %s246 = scalar_select %p245, %s21, 1
        %s247 = smul.addr %s246, 8
        %s248 = scalar_lea.vmem %s0, %s247
        %p249 = pneg %p42
        %p250 = pneg %p39
        %p251 = pneg %p63
        %p252 = pneg %p60
        %p253 = pneg %p84
        %p254 = pneg %p81
        %p255 = pneg %p105
        %p256 = pneg %p102
        %p257 = pneg %p126
        %p258 = pneg %p123
        %p259 = pneg %p147
        %p260 = pneg %p144
        %p261 = pneg %p168
        %p262 = pneg %p165
        %p263 = pneg %p194
        %p264 = pneg %p191
        %s265 = sand.u32 %s181, 1
        %s266 = scalar_lea.sflag [#allocation3], %s265
        %s267 = sand.u32 %s181, 1
        %s268 = smul.addr %s267, 8
        %s269 = scalar_lea.vmem [#allocation2], %s268
        %p270 = scmp.lt.s32.totalorder %s21, 1
        %s271 = scalar_select %p270, %s21, 1
        %s272 = smul.addr %s271, 8
        %s273 = scalar_lea.vmem %s0, %s272
        %v274 = vld [vmem:[%s273] sm:$0xff]
        %v275 = vld [vmem:[%s1] sm:$0xff]
        %v276 = vld [vmem:[%s1 + $0x8] sm:$0xff]
        %v277 = vld [vmem:[%s1 + $0x10] sm:$0xff]
        %v278 = vld [vmem:[%s1 + $0x18] sm:$0xff]
        %v279 = vld [vmem:[%s2] sm:$0x1]
        %v281 = vperm.slane %v279, 0
        %vm283 = vcmask 261120
        %v285 = vsel %vm283, %v274, 0
        %287 = vmatpush.msra.mxu0 0.0
        %288 = vmatpush.msra.mxu0 0.0
        %289 = vmatpush.msra.mxu0 0.0
        %290 = vmatpush.msra.mxu0 0.0
        %291 = vmatpush.msra.mxu0 0.0
        %292 = vmatpush.msra.mxu0 0.0
        %293 = vmatpush.msra.mxu0 0.0
        %294 = vmatpush.msra.mxu0 0.0
        %295 = vmatpush.msra.mxu0 0.0
        %296 = vmatpush.msra.mxu0 0.0
        %297 = vmatpush.msra.mxu0 0.0
        %298 = vmatpush.msra.mxu0 0.0
        %299 = vmatpush.msra.mxu0 %v278
        %300 = vmatpush.msra.mxu0 %v277
        %301 = vmatpush.msra.mxu0 %v276
        %302 = vmatpush.msra.mxu0 %v275
        %303 = vmatmul.f32.gmra.mxu0 %v285
        %v304 = vpop.f32.mrf.mxu0
        %v305 = vadd.f32 %v281, %v304
        %306 = vdwg.mxu0
        %v307 = vmul.f32 %v305, 0.5
        %v308 = vmul.f32 %v305, 0.70710677
        %vm309 = vcmp.ge.f32.partialorder %v308, 0.0
        %v310 = vsel %vm309, 1.0, -1.0
        %v311 = vand.u32 2147483647, %v308
        %v312 = vmul.f32 %v311, 0.3275911
        %v313 = vadd.f32 %v312, 1.0
        %v314 = vrcp.pop %v313
        %v315 = vmul.f32 %v313, %v314
        %v316 = vsub.f32 1.0, %v315
        %v317 = vmul.f32 %v314, %v316
        %v318 = vadd.f32 %v314, %v317
        %vm319 = vweird.f32 %v313
        %vm320 = vweird.f32 %v314
        %vm321 = vmor %vm319, %vm320
        %v322 = vsel %vm321, %v314, %v318
        %v323 = vand.u32 2147483647, %v313
        %vm324 = vcmp.eq.f32.partialorder %v323, 8.507059e+37
        %v325 = vand.u32 %v313, 2147483648
        %v326 = vor.u32 1.1754944e-38, %v325
        %v327 = vsel %vm324, %v326, %v322
        %v328 = vmul.f32 1.0, %v327
        %v329 = vmul.f32 %v328, 1.0614054
        %v330 = vadd.f32 %v329, -1.4531521
        %v331 = vmul.f32 %v330, %v328
        %v332 = vadd.f32 %v331, 1.4214138
        %v333 = vmul.f32 %v332, %v328
        %v334 = vadd.f32 %v333, -0.28449672
        %v335 = vmul.f32 %v334, %v328
        %v336 = vadd.f32 %v335, 0.2548296
        %v337 = vmul.f32 %v336, %v328
        %v338 = vsub.f32 0.0, %v311
        %v339 = vmul.f32 %v338, %v311
        %v340 = vmul.f32 %v339, 1.442695
        %v341 = vpow.pop %v340
        %v342 = vmul.f32 %v337, %v341
        %v343 = vsub.f32 1.0, %v342
        %v344 = vmul.f32 %v310, %v343
        %v345 = vadd.f32 %v344, 1.0
        %v346 = vmul.f32 %v307, %v345
        %v347 = vld [vmem:[%s3] sm:$0xff]
        %v348 = vld [vmem:[%s3 + $0x8] sm:$0xff]
        %v349 = vld [vmem:[%s3 + $0x10] sm:$0xff]
        %v350 = vld [vmem:[%s3 + $0x18] sm:$0xff]
        %v351 = vld [vmem:[%s3 + $0x20] sm:$0xff]
        %v352 = vld [vmem:[%s3 + $0x28] sm:$0xff]
        %v353 = vld [vmem:[%s3 + $0x30] sm:$0xff]
        %v354 = vld [vmem:[%s3 + $0x38] sm:$0xff]
        %v355 = vld [vmem:[%s4] sm:$0x1]
        %v357 = vperm.slane %v355, 0
        %vm359 = vcmask 523264
        %v361 = vsel %vm359, %v346, 0
        %363 = vmatpush.msra.mxu0 0.0
        %364 = vmatpush.msra.mxu0 0.0
        %365 = vmatpush.msra.mxu0 0.0
        %366 = vmatpush.msra.mxu0 0.0
        %367 = vmatpush.msra.mxu0 0.0
        %368 = vmatpush.msra.mxu0 0.0
        %369 = vmatpush.msra.mxu0 0.0
        %370 = vmatpush.msra.mxu0 0.0
        %371 = vmatpush.msra.mxu0 %v354
        %372 = vmatpush.msra.mxu0 %v353
        %373 = vmatpush.msra.mxu0 %v352
        %374 = vmatpush.msra.mxu0 %v351
        %375 = vmatpush.msra.mxu0 %v350
        %376 = vmatpush.msra.mxu0 %v349
        %377 = vmatpush.msra.mxu0 %v348
        %378 = vmatpush.msra.mxu0 %v347
        %379 = vmatmul.f32.gmra.mxu0 %v361
        %v380 = vpop.f32.mrf.mxu0
        %v381 = vadd.f32 %v357, %v380
        %382 = vdwg.mxu0
        %v383 = vadd.f32 %v274, %v381
        %v384 = vld [vmem:[%s5] sm:$0x1]
        %v385 = vld [vmem:[%s6] sm:$0x1]
        %v386 = vsel %vm283, %v383, 0.0
        %387 = vadd.xlane.f32.xlu0 %v386
        %v388 = vpop.xlane.xlu0 %387
        %v389 = vrcp.pop 32.0
        %v390 = vmul.f32 32.0, %v389
        %v391 = vsub.f32 1.0, %v390
        %v392 = vmul.f32 %v389, %v391
        %v393 = vadd.f32 %v389, %v392
        %vm394 = vweird.f32 %v389
        %v395 = vsel %vm394, %v389, %v393
        %v396 = vmul.f32 %v388, %v395
        %v397 = vsub.f32 %v383, %v396
        %v398 = vmul.f32 %v397, %v397
        %v399 = vsel %vm283, %v398, 0.0
        %400 = vadd.xlane.f32.xlu0 %v399
        %v401 = vpop.xlane.xlu0 %400
        %v402 = vmul.f32 %v401, %v395
        %v403 = vadd.f32 %v402, 1e-05
        %v404 = vrsqrt.pop %v403
        %v405 = vmul.f32 %v404, %v403
        %v406 = vmul.f32 %v405, %v404
        %v407 = vmul.f32 0.5, %v406
        %v408 = vsub.f32 1.5, %v407
        %v409 = vmul.f32 %v404, %v408
        %vm410 = vweird.f32 %v403
        %vm411 = vweird.f32 %v404
        %vm412 = vmor %vm410, %vm411
        %v413 = vsel %vm412, %v404, %v409
        %v414 = vmul.f32 %v397, %v413
        %v416 = vperm.slane %v384, 0
        %v418 = vmul.f32 %v414, %v416
        %v420 = vperm.slane %v385, 0
        %v422 = vadd.f32 %v418, %v420
        %v423 = vmax.f32 %v422, -3.4028235e+38
        %v424 = vmin.f32 %v423, 3.4028235e+38
        %425 = vst.msk [vmem:[%s269] sm:$0xff] %vm283, %v424
        %s426 = sand.u32 %s181, 1
        %s427 = scalar_lea.sflag [#allocation3], %s426
        %s428 = sand.u32 %s181, 1
        %s429 = smul.addr %s428, 8
        %s430 = scalar_lea.vmem [#allocation2], %s429
        // Predicated region
        $region49: #{bart_encoder_forward.9} parent=47 // pred_check
          %p431 = pneg %p191
        $region50: #{bart_encoder_forward.9} parent=47 // pred_check_branch
          %433 = sbr.rel (%p431) target = $region52
        $region51: #{bart_encoder_forward.9} parent=47 // pred_region
          %435 = vsyncadd %s427, 0
          %s436 = smul.addr %s21, 8
          %s437 = scalar_lea.hbm %s7, %s436
          %s439 = sshll.u32 %s430, 4
          %s440 = int_to_ptr.vmem [resolvable:$true] %s439
          %s441 = sshll.u32 %s437, 4
          %s442 = int_to_ptr.hbm [resolvable:$true] %s441
          %444 = dma.vmem_to_hbm [thread:$0]  %s440, 128, %s442, %s427
        $region52: #{bart_encoder_forward.9} parent=47 // pred_fallthru
          _
      $region48: #{bart_encoder_forward.9} parent=5 // pred_fallthru
        _
      %p445 = scmp.le.s32.totalorder 2, %s16
      // Predicated region
      $region53: #{bart_encoder_forward.9} parent=5 // pred_check
        %p446 = pneg %p445
      $region54: #{bart_encoder_forward.9} parent=5 // pred_check_branch
        %448 = sbr.rel (%p446) target = $region56
      $region55: #{bart_encoder_forward.9} parent=5 // pred_region
        %s449 = ssub.s32 %s16, 2
        // Predicated region
        $region57: #{bart_encoder_forward.9} parent=55 // pred_check
          %p450 = pneg %p197
        $region58: #{bart_encoder_forward.9} parent=55 // pred_check_branch
          %452 = sbr.rel (%p450) target = $region60
        $region59: #{bart_encoder_forward.9} parent=55 // pred_region
          %s453 = sand.u32 %s182, 1
          %s454 = scalar_lea.sflag [#allocation3], %s453
          %s455 = sand.u32 %s182, 1
          %s456 = smul.addr %s455, 8
          %s457 = scalar_lea.vmem [#allocation2], %s456
          %459 = dma.done %s454, 128
        $region60: #{bart_encoder_forward.9} parent=55 // pred_fallthru
          _
      $region56: #{bart_encoder_forward.9} parent=5 // pred_fallthru
        _
    $region6: #{bart_encoder_forward.9} parent=1 // loop_footer
      %s20 = sadd.s32 1, %s16
    $region7: #{bart_encoder_forward.9} parent=1 // loop_footer_branch
      %15 = sbr.rel target = $region3
    $region8: #{bart_encoder_forward.9} parent=1 // loop_exit
      _
    %460 = vsyncpa [#allocation3], 1
    %s461 = scalar_lea.sflag [#allocation3], 1
    %462 = vsyncpa %s461, 1

// kernel: bart_encoder_forward.7
$region0: #{bart_encoder_forward.7}
  #allocation0 [shape = 'u32[]', space=smem, size = 0x4, offset = 0x4, fixed_abs, tag = 'smem constant byte address 0x4 - core index']
  #allocation1 [shape = 'u32[72,128]{1,0:T(1,128)}', space=vmem, size = 0x9000, scoped, tag = 'internal scratch']
  %s0 = inlined_call_operand.vmem [shape: f32[2,8,32], index: 0, kind: input, shape index: {}]
  %s1 = inlined_call_operand.vmem [shape: f32[32,64], index: 1, kind: input, shape index: {}]
  %s2 = inlined_call_operand.vmem [shape: f32[1,64], index: 2, kind: input, shape index: {}]
  %s3 = inlined_call_operand.vmem [shape: f32[64,32], index: 3, kind: input, shape index: {}]
  %s4 = inlined_call_operand.vmem [shape: f32[1,32], index: 4, kind: input, shape index: {}]
  %s5 = inlined_call_operand.vmem [shape: f32[1,32], index: 5, kind: input, shape index: {}]
  %s6 = inlined_call_operand.vmem [shape: f32[1,32], index: 6, kind: input, shape index: {}]
  %s7 = inlined_call_operand.vmem [shape: f32[2,8,32], index: 7, kind: output, shape index: {}]
  %s8 = sld [smem:[#allocation0]]
  $region61: #{bart_encoder_forward.7} parent=0
    _
  %s10 = ssub.s32 1, %s8
  %s11 = scalar_select 0, %s10, %s8
  loop: start=0, step=1, limit=4
  $region2: #{bart_encoder_forward.7} parent=0 // loop_pre_header
    _
  $region3: #{bart_encoder_forward.7} parent=0 // loop_header
    %s13 = sphi 0, %s17
    %p14 = scmp.ge.s32.totalorder %s13, 4
    %s23 = sphi 0, %s25
    %s26 = sphi 0, %s23
    %s27 = sphi 0, %s26
    %s43 = sphi 0, %s27
    %s47 = sphi 0, %s47
    %s49 = sphi 0, %s47
    %s50 = sphi 0, %s49
    %s64 = sphi 0, %s50
    %s68 = sphi 0, %s68
    %s70 = sphi 0, %s68
    %s71 = sphi 0, %s70
    %s85 = sphi 0, %s71
    %s89 = sphi 0, %s89
    %s91 = sphi 0, %s89
    %s92 = sphi 0, %s91
    %s106 = sphi 0, %s92
    %s110 = sphi 0, %s110
    %s112 = sphi 0, %s110
    %s113 = sphi 0, %s112
    %s127 = sphi 0, %s113
    %s131 = sphi 0, %s131
    %s133 = sphi 0, %s131
    %s134 = sphi 0, %s133
    %s148 = sphi 0, %s134
    %s152 = sphi 0, %s152
    %s154 = sphi 0, %s152
    %s155 = sphi 0, %s154
    %s169 = sphi 0, %s155
    %s175 = sphi 0, %s177
    %s178 = sphi 0, %s175
    %s179 = sphi 0, %s178
    %s195 = sphi 0, %s179
  $region4: #{bart_encoder_forward.7} parent=0 // loop_header_branch
    %16 = sbr.rel (%p14) target = $region8
  $region5: #{bart_encoder_forward.7} parent=0 // loop_body
    %s18 = ssub.s32 %s13, 1
    %s19 = ssub.s32 %s13, 2
    %s20 = sadd.s32 %s13, 1
    %s21 = ssub.s32 %s13, %s20
    %p22 = scmp.eq.s32.totalorder %s21, 0
    %s24 = sadd.s32 %s23, 1
    %s25 = scalar_select %p22, %s23, %s24
    %p28 = pneg %p22
    %p29 = scmp.eq.s32.totalorder %s13, 1
    %p30 = por %p28, %p29
    %p31 = scmp.ne.s32.totalorder %s23, %s26
    %p32 = scmp.eq.s32.totalorder %s13, 0
    %p33 = por %p31, %p32
    %p34 = scmp.ne.s32.totalorder %s23, %s26
    %p35 = scmp.eq.s32.totalorder %s18, 1
    %p36 = por %p34, %p35
    %p37 = scmp.ne.s32.totalorder %s26, %s27
    %p38 = scmp.eq.s32.totalorder %s18, 0
    %p39 = por %p37, %p38
    %p40 = scmp.ne.s32.totalorder %s26, %s27
    %p41 = scmp.eq.s32.totalorder %s19, 1
    %p42 = por %p40, %p41
    %p44 = scmp.ne.s32.totalorder %s27, %s43
    %p45 = scmp.eq.s32.totalorder %s19, 0
    %p46 = por %p44, %p45
    %s48 = sadd.s32 %s47, 1
    %p51 = scmp.eq.s32.totalorder %s13, 1
    %p52 = scmp.ne.s32.totalorder %s47, %s49
    %p53 = scmp.eq.s32.totalorder %s13, 0
    %p54 = por %p52, %p53
    %p55 = scmp.ne.s32.totalorder %s47, %s49
    %p56 = scmp.eq.s32.totalorder %s18, 1
    %p57 = por %p55, %p56
    %p58 = scmp.ne.s32.totalorder %s49, %s50
    %p59 = scmp.eq.s32.totalorder %s18, 0
    %p60 = por %p58, %p59
    %p61 = scmp.ne.s32.totalorder %s49, %s50
    %p62 = scmp.eq.s32.totalorder %s19, 1
    %p63 = por %p61, %p62
    %p65 = scmp.ne.s32.totalorder %s50, %s64
    %p66 = scmp.eq.s32.totalorder %s19, 0
    %p67 = por %p65, %p66
    %s69 = sadd.s32 %s68, 1
    %p72 = scmp.eq.s32.totalorder %s13, 1
    %p73 = scmp.ne.s32.totalorder %s68, %s70
    %p74 = scmp.eq.s32.totalorder %s13, 0
    %p75 = por %p73, %p74
    %p76 = scmp.ne.s32.totalorder %s68, %s70
    %p77 = scmp.eq.s32.totalorder %s18, 1
    %p78 = por %p76, %p77
    %p79 = scmp.ne.s32.totalorder %s70, %s71
    %p80 = scmp.eq.s32.totalorder %s18, 0
    %p81 = por %p79, %p80
    %p82 = scmp.ne.s32.totalorder %s70, %s71
    %p83 = scmp.eq.s32.totalorder %s19, 1
    %p84 = por %p82, %p83
    %p86 = scmp.ne.s32.totalorder %s71, %s85
    %p87 = scmp.eq.s32.totalorder %s19, 0
    %p88 = por %p86, %p87
    %s90 = sadd.s32 %s89, 1
    %p93 = scmp.eq.s32.totalorder %s13, 1
    %p94 = scmp.ne.s32.totalorder %s89, %s91
    %p95 = scmp.eq.s32.totalorder %s13, 0
    %p96 = por %p94, %p95
    %p97 = scmp.ne.s32.totalorder %s89, %s91
    %p98 = scmp.eq.s32.totalorder %s18, 1
    %p99 = por %p97, %p98
    %p100 = scmp.ne.s32.totalorder %s91, %s92
    %p101 = scmp.eq.s32.totalorder %s18, 0
    %p102 = por %p100, %p101
    %p103 = scmp.ne.s32.totalorder %s91, %s92
    %p104 = scmp.eq.s32.totalorder %s19, 1
    %p105 = por %p103, %p104
    %p107 = scmp.ne.s32.totalorder %s92, %s106
    %p108 = scmp.eq.s32.totalorder %s19, 0
    %p109 = por %p107, %p108
    %s111 = sadd.s32 %s110, 1
    %p114 = scmp.eq.s32.totalorder %s13, 1
    %p115 = scmp.ne.s32.totalorder %s110, %s112
    %p116 = scmp.eq.s32.totalorder %s13, 0
    %p117 = por %p115, %p116
    %p118 = scmp.ne.s32.totalorder %s110, %s112
    %p119 = scmp.eq.s32.totalorder %s18, 1
    %p120 = por %p118, %p119
    %p121 = scmp.ne.s32.totalorder %s112, %s113
    %p122 = scmp.eq.s32.totalorder %s18, 0
    %p123 = por %p121, %p122
    %p124 = scmp.ne.s32.totalorder %s112, %s113
    %p125 = scmp.eq.s32.totalorder %s19, 1
    %p126 = por %p124, %p125
    %p128 = scmp.ne.s32.totalorder %s113, %s127
    %p129 = scmp.eq.s32.totalorder %s19, 0
    %p130 = por %p128, %p129
    %s132 = sadd.s32 %s131, 1
    %p135 = scmp.eq.s32.totalorder %s13, 1
    %p136 = scmp.ne.s32.totalorder %s131, %s133
    %p137 = scmp.eq.s32.totalorder %s13, 0
    %p138 = por %p136, %p137
    %p139 = scmp.ne.s32.totalorder %s131, %s133
    %p140 = scmp.eq.s32.totalorder %s18, 1
    %p141 = por %p139, %p140
    %p142 = scmp.ne.s32.totalorder %s133, %s134
    %p143 = scmp.eq.s32.totalorder %s18, 0
    %p144 = por %p142, %p143
    %p145 = scmp.ne.s32.totalorder %s133, %s134
    %p146 = scmp.eq.s32.totalorder %s19, 1
    %p147 = por %p145, %p146
    %p149 = scmp.ne.s32.totalorder %s134, %s148
    %p150 = scmp.eq.s32.totalorder %s19, 0
    %p151 = por %p149, %p150
    %s153 = sadd.s32 %s152, 1
    %p156 = scmp.eq.s32.totalorder %s13, 1
    %p157 = scmp.ne.s32.totalorder %s152, %s154
    %p158 = scmp.eq.s32.totalorder %s13, 0
    %p159 = por %p157, %p158
    %p160 = scmp.ne.s32.totalorder %s152, %s154
    %p161 = scmp.eq.s32.totalorder %s18, 1
    %p162 = por %p160, %p161
    %p163 = scmp.ne.s32.totalorder %s154, %s155
    %p164 = scmp.eq.s32.totalorder %s18, 0
    %p165 = por %p163, %p164
    %p166 = scmp.ne.s32.totalorder %s154, %s155
    %p167 = scmp.eq.s32.totalorder %s19, 1
    %p168 = por %p166, %p167
    %p170 = scmp.ne.s32.totalorder %s155, %s169
    %p171 = scmp.eq.s32.totalorder %s19, 0
    %p172 = por %p170, %p171
    %s173 = ssub.s32 %s13, %s20
    %p174 = scmp.eq.s32.totalorder %s173, 0
    %s176 = sadd.s32 %s175, 1
    %s177 = scalar_select %p174, %s175, %s176
    %p180 = pneg %p174
    %p181 = scmp.eq.s32.totalorder %s13, 1
    %p182 = por %p180, %p181
    %p183 = scmp.ne.s32.totalorder %s175, %s178
    %p184 = scmp.eq.s32.totalorder %s13, 0
    %p185 = por %p183, %p184
    %p186 = scmp.ne.s32.totalorder %s175, %s178
    %p187 = scmp.eq.s32.totalorder %s18, 1
    %p188 = por %p186, %p187
    %p189 = scmp.ne.s32.totalorder %s178, %s179
    %p190 = scmp.eq.s32.totalorder %s18, 0
    %p191 = por %p189, %p190
    %p192 = scmp.ne.s32.totalorder %s178, %s179
    %p193 = scmp.eq.s32.totalorder %s19, 1
    %p194 = por %p192, %p193
    %p196 = scmp.ne.s32.totalorder %s179, %s195
    %p197 = scmp.eq.s32.totalorder %s19, 0
    %p198 = por %p196, %p197
    %p199 = scmp.le.s32.totalorder 1, %s13
    %p200 = scmp.lt.s32.totalorder %s13, 3
    %p201 = pnand %p199, %p200
    %p202 = pneg %p201
    // Predicated region
    $region9: #{bart_encoder_forward.7} parent=5 // pred_check
      _
    $region10: #{bart_encoder_forward.7} parent=5 // pred_check_branch
      %204 = sbr.rel (%p201) target = $region12
    $region11: #{bart_encoder_forward.7} parent=5 // pred_region
      %s205 = ssub.s32 %s13, 1
      // Predicated region
      $region13: #{bart_encoder_forward.7} parent=11 // pred_check
        %p206 = pneg %p60
      $region14: #{bart_encoder_forward.7} parent=11 // pred_check_branch
        %208 = sbr.rel (%p206) target = $region16
      $region15: #{bart_encoder_forward.7} parent=11 // pred_region
        _
      $region16: #{bart_encoder_forward.7} parent=11 // pred_fallthru
        _
      // Predicated region
      $region17: #{bart_encoder_forward.7} parent=11 // pred_check
        %p209 = pneg %p81
      $region18: #{bart_encoder_forward.7} parent=11 // pred_check_branch
        %211 = sbr.rel (%p209) target = $region20
      $region19: #{bart_encoder_forward.7} parent=11 // pred_region
        _
      $region20: #{bart_encoder_forward.7} parent=11 // pred_fallthru
        _
      // Predicated region
      $region21: #{bart_encoder_forward.7} parent=11 // pred_check
        %p212 = pneg %p102
      $region22: #{bart_encoder_forward.7} parent=11 // pred_check_branch
        %214 = sbr.rel (%p212) target = $region24
      $region23: #{bart_encoder_forward.7} parent=11 // pred_region
        _
      $region24: #{bart_encoder_forward.7} parent=11 // pred_fallthru
        _
      // Predicated region
      $region25: #{bart_encoder_forward.7} parent=11 // pred_check
        %p215 = pneg %p123
      $region26: #{bart_encoder_forward.7} parent=11 // pred_check_branch
        %217 = sbr.rel (%p215) target = $region28
      $region27: #{bart_encoder_forward.7} parent=11 // pred_region
        _
      $region28: #{bart_encoder_forward.7} parent=11 // pred_fallthru
        _
      // Predicated region
      $region29: #{bart_encoder_forward.7} parent=11 // pred_check
        %p218 = pneg %p144
      $region30: #{bart_encoder_forward.7} parent=11 // pred_check_branch
        %220 = sbr.rel (%p218) target = $region32
      $region31: #{bart_encoder_forward.7} parent=11 // pred_region
        _
      $region32: #{bart_encoder_forward.7} parent=11 // pred_fallthru
        _
      // Predicated region
      $region33: #{bart_encoder_forward.7} parent=11 // pred_check
        %p221 = pneg %p165
      $region34: #{bart_encoder_forward.7} parent=11 // pred_check_branch
        %223 = sbr.rel (%p221) target = $region36
      $region35: #{bart_encoder_forward.7} parent=11 // pred_region
        _
      $region36: #{bart_encoder_forward.7} parent=11 // pred_fallthru
        _
    $region12: #{bart_encoder_forward.7} parent=5 // pred_fallthru
      _
    %p224 = scmp.lt.s32.totalorder %s13, 2
    // Predicated region
    $region37: #{bart_encoder_forward.7} parent=5 // pred_check
      %p225 = pneg %p224
    $region38: #{bart_encoder_forward.7} parent=5 // pred_check_branch
      %227 = sbr.rel (%p225) target = $region40
    $region39: #{bart_encoder_forward.7} parent=5 // pred_region
      // Predicated region
      $region41: #{bart_encoder_forward.7} parent=39 // pred_check
        %p228 = pneg %p33
      $region42: #{bart_encoder_forward.7} parent=39 // pred_check_branch
        %230 = sbr.rel (%p228) target = $region44
      $region43: #{bart_encoder_forward.7} parent=39 // pred_region
        %p231 = scmp.lt.s32.totalorder %s13, 1
        %s232 = scalar_select %p231, %s13, 1
        %s233 = smul.addr %s232, 8
        %s234 = scalar_lea.vmem %s0, %s233
      $region44: #{bart_encoder_forward.7} parent=39 // pred_fallthru
        _
    $region40: #{bart_encoder_forward.7} parent=5 // pred_fallthru
      _
    %p235 = scmp.le.s32.totalorder 1, %s13
    %p236 = scmp.lt.s32.totalorder %s13, 3
    %p237 = pnand %p235, %p236
    %p238 = pneg %p237
    // Predicated region
    $region45: #{bart_encoder_forward.7} parent=5 // pred_check
      _
    $region46: #{bart_encoder_forward.7} parent=5 // pred_check_branch
      %240 = sbr.rel (%p237) target = $region48
    $region47: #{bart_encoder_forward.7} parent=5 // pred_region
      %s241 = ssub.s32 %s13, 1
      %p242 = scmp.lt.s32.totalorder %s18, 1
      %s243 = scalar_select %p242, %s18, 1
      %s244 = smul.addr %s243, 8
      %s245 = scalar_lea.vmem %s0, %s244
      %p246 = pneg %p39
      %p247 = pneg %p36
      %p248 = pneg %p60
      %p249 = pneg %p57
      %p250 = pneg %p81
      %p251 = pneg %p78
      %p252 = pneg %p102
      %p253 = pneg %p99
      %p254 = pneg %p123
      %p255 = pneg %p120
      %p256 = pneg %p144
      %p257 = pneg %p141
      %p258 = pneg %p165
      %p259 = pneg %p162
      %p260 = pneg %p191
      %p261 = pneg %p188
      %p262 = scmp.lt.s32.totalorder %s18, 1
      %s263 = scalar_select %p262, %s18, 1
      %s264 = smul.addr %s263, 8
      %s265 = scalar_lea.vmem %s7, %s264
      %p266 = scmp.lt.s32.totalorder %s18, 1
      %s267 = scalar_select %p266, %s18, 1
      %s268 = smul.addr %s267, 8
      %s269 = scalar_lea.vmem %s0, %s268
      %p270 = scmp.lt.s32.totalorder %s18, 1
      %s271 = scalar_select %p270, %s18, 1
      %s272 = smul.addr %s271, 8
      %s273 = scalar_lea.vmem %s7, %s272
      %v274 = vld [vmem:[%s269] sm:$0xff]
      %v275 = vld [vmem:[%s1] sm:$0xff]
      %v276 = vld [vmem:[%s1 + $0x8] sm:$0xff]
      %v277 = vld [vmem:[%s1 + $0x10] sm:$0xff]
      %v278 = vld [vmem:[%s1 + $0x18] sm:$0xff]
      %v279 = vld [vmem:[%s2] sm:$0x1]
      %v281 = vperm.slane %v279, 0
      %vm283 = vcmask 261120
      %v285 = vsel %vm283, %v274, 0
      %287 = vmatpush.msra.mxu0 0.0
      %288 = vmatpush.msra.mxu0 0.0
      %289 = vmatpush.msra.mxu0 0.0
      %290 = vmatpush.msra.mxu0 0.0
      %291 = vmatpush.msra.mxu0 0.0
      %292 = vmatpush.msra.mxu0 0.0
      %293 = vmatpush.msra.mxu0 0.0
      %294 = vmatpush.msra.mxu0 0.0
      %295 = vmatpush.msra.mxu0 0.0
      %296 = vmatpush.msra.mxu0 0.0
      %297 = vmatpush.msra.mxu0 0.0
      %298 = vmatpush.msra.mxu0 0.0
      %299 = vmatpush.msra.mxu0 %v278
      %300 = vmatpush.msra.mxu0 %v277
      %301 = vmatpush.msra.mxu0 %v276
      %302 = vmatpush.msra.mxu0 %v275
      %303 = vmatmul.f32.gmra.mxu0 %v285
      %v304 = vpop.f32.mrf.mxu0
      %v305 = vadd.f32 %v281, %v304
      %306 = vdwg.mxu0
      %v307 = vmul.f32 %v305, 0.5
      %v308 = vmul.f32 %v305, 0.70710677
      %vm309 = vcmp.ge.f32.partialorder %v308, 0.0
      %v310 = vsel %vm309, 1.0, -1.0
      %v311 = vand.u32 2147483647, %v308
      %v312 = vmul.f32 %v311, 0.3275911
      %v313 = vadd.f32 %v312, 1.0
      %v314 = vrcp.pop %v313
      %v315 = vmul.f32 %v313, %v314
      %v316 = vsub.f32 1.0, %v315
      %v317 = vmul.f32 %v314, %v316
      %v318 = vadd.f32 %v314, %v317
      %vm319 = vweird.f32 %v313
      %vm320 = vweird.f32 %v314
      %vm321 = vmor %vm319, %vm320
      %v322 = vsel %vm321, %v314, %v318
      %v323 = vand.u32 2147483647, %v313
      %vm324 = vcmp.eq.f32.partialorder %v323, 8.507059e+37
      %v325 = vand.u32 %v313, 2147483648
      %v326 = vor.u32 1.1754944e-38, %v325
      %v327 = vsel %vm324, %v326, %v322
      %v328 = vmul.f32 1.0, %v327
      %v329 = vmul.f32 %v328, 1.0614054
      %v330 = vadd.f32 %v329, -1.4531521
      %v331 = vmul.f32 %v330, %v328
      %v332 = vadd.f32 %v331, 1.4214138
      %v333 = vmul.f32 %v332, %v328
      %v334 = vadd.f32 %v333, -0.28449672
      %v335 = vmul.f32 %v334, %v328
      %v336 = vadd.f32 %v335, 0.2548296
      %v337 = vmul.f32 %v336, %v328
      %v338 = vsub.f32 0.0, %v311
      %v339 = vmul.f32 %v338, %v311
      %v340 = vmul.f32 %v339, 1.442695
      %v341 = vpow.pop %v340
      %v342 = vmul.f32 %v337, %v341
      %v343 = vsub.f32 1.0, %v342
      %v344 = vmul.f32 %v310, %v343
      %v345 = vadd.f32 %v344, 1.0
      %v346 = vmul.f32 %v307, %v345
      %v347 = vld [vmem:[%s3] sm:$0xff]
      %v348 = vld [vmem:[%s3 + $0x8] sm:$0xff]
      %v349 = vld [vmem:[%s3 + $0x10] sm:$0xff]
      %v350 = vld [vmem:[%s3 + $0x18] sm:$0xff]
      %v351 = vld [vmem:[%s3 + $0x20] sm:$0xff]
      %v352 = vld [vmem:[%s3 + $0x28] sm:$0xff]
      %v353 = vld [vmem:[%s3 + $0x30] sm:$0xff]
      %v354 = vld [vmem:[%s3 + $0x38] sm:$0xff]
      %v355 = vld [vmem:[%s4] sm:$0x1]
      %v357 = vperm.slane %v355, 0
      %vm359 = vcmask 523264
      %v361 = vsel %vm359, %v346, 0
      %363 = vmatpush.msra.mxu0 0.0
      %364 = vmatpush.msra.mxu0 0.0
      %365 = vmatpush.msra.mxu0 0.0
      %366 = vmatpush.msra.mxu0 0.0
      %367 = vmatpush.msra.mxu0 0.0
      %368 = vmatpush.msra.mxu0 0.0
      %369 = vmatpush.msra.mxu0 0.0
      %370 = vmatpush.msra.mxu0 0.0
      %371 = vmatpush.msra.mxu0 %v354
      %372 = vmatpush.msra.mxu0 %v353
      %373 = vmatpush.msra.mxu0 %v352
      %374 = vmatpush.msra.mxu0 %v351
      %375 = vmatpush.msra.mxu0 %v350
      %376 = vmatpush.msra.mxu0 %v349
      %377 = vmatpush.msra.mxu0 %v348
      %378 = vmatpush.msra.mxu0 %v347
      %379 = vmatmul.f32.gmra.mxu0 %v361
      %v380 = vpop.f32.mrf.mxu0
      %v381 = vadd.f32 %v357, %v380
      %382 = vdwg.mxu0
      %v383 = vadd.f32 %v274, %v381
      %v384 = vld [vmem:[%s5] sm:$0x1]
      %v385 = vld [vmem:[%s6] sm:$0x1]
      %v386 = vsel %vm283, %v383, 0.0
      %387 = vadd.xlane.f32.xlu0 %v386
      %v388 = vpop.xlane.xlu0 %387
      %v389 = vrcp.pop 32.0
      %v390 = vmul.f32 32.0, %v389
      %v391 = vsub.f32 1.0, %v390
      %v392 = vmul.f32 %v389, %v391
      %v393 = vadd.f32 %v389, %v392
      %vm394 = vweird.f32 %v389
      %v395 = vsel %vm394, %v389, %v393
      %v396 = vmul.f32 %v388, %v395
      %v397 = vsub.f32 %v383, %v396
      %v398 = vmul.f32 %v397, %v397
      %v399 = vsel %vm283, %v398, 0.0
      %400 = vadd.xlane.f32.xlu0 %v399
      %v401 = vpop.xlane.xlu0 %400
      %v402 = vmul.f32 %v401, %v395
      %v403 = vadd.f32 %v402, 1e-05
      %v404 = vrsqrt.pop %v403
      %v405 = vmul.f32 %v404, %v403
      %v406 = vmul.f32 %v405, %v404
      %v407 = vmul.f32 0.5, %v406
      %v408 = vsub.f32 1.5, %v407
      %v409 = vmul.f32 %v404, %v408
      %vm410 = vweird.f32 %v403
      %vm411 = vweird.f32 %v404
      %vm412 = vmor %vm410, %vm411
      %v413 = vsel %vm412, %v404, %v409
      %v414 = vmul.f32 %v397, %v413
      %v416 = vperm.slane %v384, 0
      %v418 = vmul.f32 %v414, %v416
      %v420 = vperm.slane %v385, 0
      %v422 = vadd.f32 %v418, %v420
      %v423 = vmax.f32 %v422, -3.4028235e+38
      %v424 = vmin.f32 %v423, 3.4028235e+38
      %425 = vst.msk [vmem:[%s273] sm:$0xff] %vm283, %v424
      %p426 = scmp.lt.s32.totalorder %s18, 1
      %s427 = scalar_select %p426, %s18, 1
      %s428 = smul.addr %s427, 8
      %s429 = scalar_lea.vmem %s7, %s428
      // Predicated region
      $region49: #{bart_encoder_forward.7} parent=47 // pred_check
        %p430 = pneg %p188
      $region50: #{bart_encoder_forward.7} parent=47 // pred_check_branch
        %432 = sbr.rel (%p430) target = $region52
      $region51: #{bart_encoder_forward.7} parent=47 // pred_region
        _
      $region52: #{bart_encoder_forward.7} parent=47 // pred_fallthru
        _
    $region48: #{bart_encoder_forward.7} parent=5 // pred_fallthru
      _
    %p433 = scmp.le.s32.totalorder 2, %s13
    // Predicated region
    $region53: #{bart_encoder_forward.7} parent=5 // pred_check
      %p434 = pneg %p433
    $region54: #{bart_encoder_forward.7} parent=5 // pred_check_branch
      %436 = sbr.rel (%p434) target = $region56
    $region55: #{bart_encoder_forward.7} parent=5 // pred_region
      %s437 = ssub.s32 %s13, 2
      // Predicated region
      $region57: #{bart_encoder_forward.7} parent=55 // pred_check
        %p438 = pneg %p194
      $region58: #{bart_encoder_forward.7} parent=55 // pred_check_branch
        %440 = sbr.rel (%p438) target = $region60
      $region59: #{bart_encoder_forward.7} parent=55 // pred_region
        %p441 = scmp.lt.s32.totalorder %s19, 1
        %s442 = scalar_select %p441, %s19, 1
        %s443 = smul.addr %s442, 8
        %s444 = scalar_lea.vmem %s7, %s443
      $region60: #{bart_encoder_forward.7} parent=55 // pred_fallthru
        _
    $region56: #{bart_encoder_forward.7} parent=5 // pred_fallthru
      _
  $region6: #{bart_encoder_forward.7} parent=0 // loop_footer
    %s17 = sadd.s32 1, %s13
  $region7: #{bart_encoder_forward.7} parent=0 // loop_footer_branch
    %12 = sbr.rel target = $region3
  $region8: #{bart_encoder_forward.7} parent=0 // loop_exit
    _

// kernel: bart_encoder_forward.6
$region0: #{bart_encoder_forward.6}
  #allocation0 [shape = 'u32[]', space=smem, size = 0x4, offset = 0x4, fixed_abs, tag = 'smem constant byte address 0x4 - core index']
  #allocation1 [shape = 'u32[72,128]{1,0:T(1,128)}', space=vmem, size = 0x9000, scoped, tag = 'internal scratch']
  %s0 = inlined_call_operand.vmem [shape: f32[2,8,32], index: 0, kind: input, shape index: {}]
  %s1 = inlined_call_operand.vmem [shape: f32[2,1,8], index: 1, kind: input, shape index: {}]
  %s2 = inlined_call_operand.vmem [shape: f32[32,96], index: 2, kind: input, shape index: {}]
  %s3 = inlined_call_operand.vmem [shape: f32[1,96], index: 3, kind: input, shape index: {}]
  %s4 = inlined_call_operand.vmem [shape: f32[32,32], index: 4, kind: input, shape index: {}]
  %s5 = inlined_call_operand.vmem [shape: f32[1,32], index: 5, kind: input, shape index: {}]
  %s6 = inlined_call_operand.vmem [shape: f32[1,32], index: 6, kind: input, shape index: {}]
  %s7 = inlined_call_operand.vmem [shape: f32[1,32], index: 7, kind: input, shape index: {}]
  %s8 = inlined_call_operand.vmem [shape: f32[2,8,32], index: 8, kind: output, shape index: {}]
  %s9 = sld [smem:[#allocation0]]
  $region65: #{bart_encoder_forward.6} parent=0
    _
  %s11 = ssub.s32 1, %s9
  %s12 = scalar_select 0, %s11, %s9
  loop: start=0, step=1, limit=4
  $region2: #{bart_encoder_forward.6} parent=0 // loop_pre_header
    _
  $region3: #{bart_encoder_forward.6} parent=0 // loop_header
    %s14 = sphi 0, %s18
    %p15 = scmp.ge.s32.totalorder %s14, 4
    %s24 = sphi 0, %s26
    %s27 = sphi 0, %s24
    %s28 = sphi 0, %s27
    %s44 = sphi 0, %s28
    %s50 = sphi 0, %s52
    %s53 = sphi 0, %s50
    %s54 = sphi 0, %s53
    %s70 = sphi 0, %s54
    %s74 = sphi 0, %s74
    %s76 = sphi 0, %s74
    %s77 = sphi 0, %s76
    %s91 = sphi 0, %s77
    %s95 = sphi 0, %s95
    %s97 = sphi 0, %s95
    %s98 = sphi 0, %s97
    %s112 = sphi 0, %s98
    %s116 = sphi 0, %s116
    %s118 = sphi 0, %s116
    %s119 = sphi 0, %s118
    %s133 = sphi 0, %s119
    %s137 = sphi 0, %s137
    %s139 = sphi 0, %s137
    %s140 = sphi 0, %s139
    %s154 = sphi 0, %s140
    %s158 = sphi 0, %s158
    %s160 = sphi 0, %s158
    %s161 = sphi 0, %s160
    %s175 = sphi 0, %s161
    %s179 = sphi 0, %s179
    %s181 = sphi 0, %s179
    %s182 = sphi 0, %s181
    %s196 = sphi 0, %s182
    %s202 = sphi 0, %s204
    %s205 = sphi 0, %s202
    %s206 = sphi 0, %s205
    %s222 = sphi 0, %s206
  $region4: #{bart_encoder_forward.6} parent=0 // loop_header_branch
    %17 = sbr.rel (%p15) target = $region8
  $region5: #{bart_encoder_forward.6} parent=0 // loop_body
    %s19 = ssub.s32 %s14, 1
    %s20 = ssub.s32 %s14, 2
    %s21 = sadd.s32 %s14, 1
    %s22 = ssub.s32 %s14, %s21
    %p23 = scmp.eq.s32.totalorder %s22, 0
    %s25 = sadd.s32 %s24, 1
    %s26 = scalar_select %p23, %s24, %s25
    %p29 = pneg %p23
    %p30 = scmp.eq.s32.totalorder %s14, 1
    %p31 = por %p29, %p30
    %p32 = scmp.ne.s32.totalorder %s24, %s27
    %p33 = scmp.eq.s32.totalorder %s14, 0
    %p34 = por %p32, %p33
    %p35 = scmp.ne.s32.totalorder %s24, %s27
    %p36 = scmp.eq.s32.totalorder %s19, 1
    %p37 = por %p35, %p36
    %p38 = scmp.ne.s32.totalorder %s27, %s28
    %p39 = scmp.eq.s32.totalorder %s19, 0
    %p40 = por %p38, %p39
    %p41 = scmp.ne.s32.totalorder %s27, %s28
    %p42 = scmp.eq.s32.totalorder %s20, 1
    %p43 = por %p41, %p42
    %p45 = scmp.ne.s32.totalorder %s28, %s44
    %p46 = scmp.eq.s32.totalorder %s20, 0
    %p47 = por %p45, %p46
    %s48 = ssub.s32 %s14, %s21
    %p49 = scmp.eq.s32.totalorder %s48, 0
    %s51 = sadd.s32 %s50, 1
    %s52 = scalar_select %p49, %s50, %s51
    %p55 = pneg %p49
    %p56 = scmp.eq.s32.totalorder %s14, 1
    %p57 = por %p55, %p56
    %p58 = scmp.ne.s32.totalorder %s50, %s53
    %p59 = scmp.eq.s32.totalorder %s14, 0
    %p60 = por %p58, %p59
    %p61 = scmp.ne.s32.totalorder %s50, %s53
    %p62 = scmp.eq.s32.totalorder %s19, 1
    %p63 = por %p61, %p62
    %p64 = scmp.ne.s32.totalorder %s53, %s54
    %p65 = scmp.eq.s32.totalorder %s19, 0
    %p66 = por %p64, %p65
    %p67 = scmp.ne.s32.totalorder %s53, %s54
    %p68 = scmp.eq.s32.totalorder %s20, 1
    %p69 = por %p67, %p68
    %p71 = scmp.ne.s32.totalorder %s54, %s70
    %p72 = scmp.eq.s32.totalorder %s20, 0
    %p73 = por %p71, %p72
    %s75 = sadd.s32 %s74, 1
    %p78 = scmp.eq.s32.totalorder %s14, 1
    %p79 = scmp.ne.s32.totalorder %s74, %s76
    %p80 = scmp.eq.s32.totalorder %s14, 0
    %p81 = por %p79, %p80
    %p82 = scmp.ne.s32.totalorder %s74, %s76
    %p83 = scmp.eq.s32.totalorder %s19, 1
    %p84 = por %p82, %p83
    %p85 = scmp.ne.s32.totalorder %s76, %s77
    %p86 = scmp.eq.s32.totalorder %s19, 0
    %p87 = por %p85, %p86
    %p88 = scmp.ne.s32.totalorder %s76, %s77
    %p89 = scmp.eq.s32.totalorder %s20, 1
    %p90 = por %p88, %p89
    %p92 = scmp.ne.s32.totalorder %s77, %s91
    %p93 = scmp.eq.s32.totalorder %s20, 0
    %p94 = por %p92, %p93
    %s96 = sadd.s32 %s95, 1
    %p99 = scmp.eq.s32.totalorder %s14, 1
    %p100 = scmp.ne.s32.totalorder %s95, %s97
    %p101 = scmp.eq.s32.totalorder %s14, 0
    %p102 = por %p100, %p101
    %p103 = scmp.ne.s32.totalorder %s95, %s97
    %p104 = scmp.eq.s32.totalorder %s19, 1
    %p105 = por %p103, %p104
    %p106 = scmp.ne.s32.totalorder %s97, %s98
    %p107 = scmp.eq.s32.totalorder %s19, 0
    %p108 = por %p106, %p107
    %p109 = scmp.ne.s32.totalorder %s97, %s98
    %p110 = scmp.eq.s32.totalorder %s20, 1
    %p111 = por %p109, %p110
    %p113 = scmp.ne.s32.totalorder %s98, %s112
    %p114 = scmp.eq.s32.totalorder %s20, 0
    %p115 = por %p113, %p114
    %s117 = sadd.s32 %s116, 1
    %p120 = scmp.eq.s32.totalorder %s14, 1
    %p121 = scmp.ne.s32.totalorder %s116, %s118
    %p122 = scmp.eq.s32.totalorder %s14, 0
    %p123 = por %p121, %p122
    %p124 = scmp.ne.s32.totalorder %s116, %s118
    %p125 = scmp.eq.s32.totalorder %s19, 1
    %p126 = por %p124, %p125
    %p127 = scmp.ne.s32.totalorder %s118, %s119
    %p128 = scmp.eq.s32.totalorder %s19, 0
    %p129 = por %p127, %p128
    %p130 = scmp.ne.s32.totalorder %s118, %s119
    %p131 = scmp.eq.s32.totalorder %s20, 1
    %p132 = por %p130, %p131
    %p134 = scmp.ne.s32.totalorder %s119, %s133
    %p135 = scmp.eq.s32.totalorder %s20, 0
    %p136 = por %p134, %p135
    %s138 = sadd.s32 %s137, 1
    %p141 = scmp.eq.s32.totalorder %s14, 1
    %p142 = scmp.ne.s32.totalorder %s137, %s139
    %p143 = scmp.eq.s32.totalorder %s14, 0
    %p144 = por %p142, %p143
    %p145 = scmp.ne.s32.totalorder %s137, %s139
    %p146 = scmp.eq.s32.totalorder %s19, 1
    %p147 = por %p145, %p146
    %p148 = scmp.ne.s32.totalorder %s139, %s140
    %p149 = scmp.eq.s32.totalorder %s19, 0
    %p150 = por %p148, %p149
    %p151 = scmp.ne.s32.totalorder %s139, %s140
    %p152 = scmp.eq.s32.totalorder %s20, 1
    %p153 = por %p151, %p152
    %p155 = scmp.ne.s32.totalorder %s140, %s154
    %p156 = scmp.eq.s32.totalorder %s20, 0
    %p157 = por %p155, %p156
    %s159 = sadd.s32 %s158, 1
    %p162 = scmp.eq.s32.totalorder %s14, 1
    %p163 = scmp.ne.s32.totalorder %s158, %s160
    %p164 = scmp.eq.s32.totalorder %s14, 0
    %p165 = por %p163, %p164
    %p166 = scmp.ne.s32.totalorder %s158, %s160
    %p167 = scmp.eq.s32.totalorder %s19, 1
    %p168 = por %p166, %p167
    %p169 = scmp.ne.s32.totalorder %s160, %s161
    %p170 = scmp.eq.s32.totalorder %s19, 0
    %p171 = por %p169, %p170
    %p172 = scmp.ne.s32.totalorder %s160, %s161
    %p173 = scmp.eq.s32.totalorder %s20, 1
    %p174 = por %p172, %p173
    %p176 = scmp.ne.s32.totalorder %s161, %s175
    %p177 = scmp.eq.s32.totalorder %s20, 0
    %p178 = por %p176, %p177
    %s180 = sadd.s32 %s179, 1
    %p183 = scmp.eq.s32.totalorder %s14, 1
    %p184 = scmp.ne.s32.totalorder %s179, %s181
    %p185 = scmp.eq.s32.totalorder %s14, 0
    %p186 = por %p184, %p185
    %p187 = scmp.ne.s32.totalorder %s179, %s181
    %p188 = scmp.eq.s32.totalorder %s19, 1
    %p189 = por %p187, %p188
    %p190 = scmp.ne.s32.totalorder %s181, %s182
    %p191 = scmp.eq.s32.totalorder %s19, 0
    %p192 = por %p190, %p191
    %p193 = scmp.ne.s32.totalorder %s181, %s182
    %p194 = scmp.eq.s32.totalorder %s20, 1
    %p195 = por %p193, %p194
    %p197 = scmp.ne.s32.totalorder %s182, %s196
    %p198 = scmp.eq.s32.totalorder %s20, 0
    %p199 = por %p197, %p198
    %s200 = ssub.s32 %s14, %s21
    %p201 = scmp.eq.s32.totalorder %s200, 0
    %s203 = sadd.s32 %s202, 1
    %s204 = scalar_select %p201, %s202, %s203
    %p207 = pneg %p201
    %p208 = scmp.eq.s32.totalorder %s14, 1
    %p209 = por %p207, %p208
    %p210 = scmp.ne.s32.totalorder %s202, %s205
    %p211 = scmp.eq.s32.totalorder %s14, 0
    %p212 = por %p210, %p211
    %p213 = scmp.ne.s32.totalorder %s202, %s205
    %p214 = scmp.eq.s32.totalorder %s19, 1
    %p215 = por %p213, %p214
    %p216 = scmp.ne.s32.totalorder %s205, %s206
    %p217 = scmp.eq.s32.totalorder %s19, 0
    %p218 = por %p216, %p217
    %p219 = scmp.ne.s32.totalorder %s205, %s206
    %p220 = scmp.eq.s32.totalorder %s20, 1
    %p221 = por %p219, %p220
    %p223 = scmp.ne.s32.totalorder %s206, %s222
    %p224 = scmp.eq.s32.totalorder %s20, 0
    %p225 = por %p223, %p224
    %p226 = scmp.le.s32.totalorder 1, %s14
    %p227 = scmp.lt.s32.totalorder %s14, 3
    %p228 = pnand %p226, %p227
    %p229 = pneg %p228
    // Predicated region
    $region9: #{bart_encoder_forward.6} parent=5 // pred_check
      _
    $region10: #{bart_encoder_forward.6} parent=5 // pred_check_branch
      %231 = sbr.rel (%p228) target = $region12
    $region11: #{bart_encoder_forward.6} parent=5 // pred_region
      %s232 = ssub.s32 %s14, 1
      // Predicated region
      $region13: #{bart_encoder_forward.6} parent=11 // pred_check
        %p233 = pneg %p87
      $region14: #{bart_encoder_forward.6} parent=11 // pred_check_branch
        %235 = sbr.rel (%p233) target = $region16
      $region15: #{bart_encoder_forward.6} parent=11 // pred_region
        _
      $region16: #{bart_encoder_forward.6} parent=11 // pred_fallthru
        _
      // Predicated region
      $region17: #{bart_encoder_forward.6} parent=11 // pred_check
        %p236 = pneg %p108
      $region18: #{bart_encoder_forward.6} parent=11 // pred_check_branch
        %238 = sbr.rel (%p236) target = $region20
      $region19: #{bart_encoder_forward.6} parent=11 // pred_region
        _
      $region20: #{bart_encoder_forward.6} parent=11 // pred_fallthru
        _
      // Predicated region
      $region21: #{bart_encoder_forward.6} parent=11 // pred_check
        %p239 = pneg %p129
      $region22: #{bart_encoder_forward.6} parent=11 // pred_check_branch
        %241 = sbr.rel (%p239) target = $region24
      $region23: #{bart_encoder_forward.6} parent=11 // pred_region
        _
      $region24: #{bart_encoder_forward.6} parent=11 // pred_fallthru
        _
      // Predicated region
      $region25: #{bart_encoder_forward.6} parent=11 // pred_check
        %p242 = pneg %p150
      $region26: #{bart_encoder_forward.6} parent=11 // pred_check_branch
        %244 = sbr.rel (%p242) target = $region28
      $region27: #{bart_encoder_forward.6} parent=11 // pred_region
        _
      $region28: #{bart_encoder_forward.6} parent=11 // pred_fallthru
        _
      // Predicated region
      $region29: #{bart_encoder_forward.6} parent=11 // pred_check
        %p245 = pneg %p171
      $region30: #{bart_encoder_forward.6} parent=11 // pred_check_branch
        %247 = sbr.rel (%p245) target = $region32
      $region31: #{bart_encoder_forward.6} parent=11 // pred_region
        _
      $region32: #{bart_encoder_forward.6} parent=11 // pred_fallthru
        _
      // Predicated region
      $region33: #{bart_encoder_forward.6} parent=11 // pred_check
        %p248 = pneg %p192
      $region34: #{bart_encoder_forward.6} parent=11 // pred_check_branch
        %250 = sbr.rel (%p248) target = $region36
      $region35: #{bart_encoder_forward.6} parent=11 // pred_region
        _
      $region36: #{bart_encoder_forward.6} parent=11 // pred_fallthru
        _
    $region12: #{bart_encoder_forward.6} parent=5 // pred_fallthru
      _
    %p251 = scmp.lt.s32.totalorder %s14, 2
    // Predicated region
    $region37: #{bart_encoder_forward.6} parent=5 // pred_check
      %p252 = pneg %p251
    $region38: #{bart_encoder_forward.6} parent=5 // pred_check_branch
      %254 = sbr.rel (%p252) target = $region40
    $region39: #{bart_encoder_forward.6} parent=5 // pred_region
      // Predicated region
      $region41: #{bart_encoder_forward.6} parent=39 // pred_check
        %p255 = pneg %p34
      $region42: #{bart_encoder_forward.6} parent=39 // pred_check_branch
        %257 = sbr.rel (%p255) target = $region44
      $region43: #{bart_encoder_forward.6} parent=39 // pred_region
        %p258 = scmp.lt.s32.totalorder %s14, 1
        %s259 = scalar_select %p258, %s14, 1
        %s260 = smul.addr %s259, 8
        %s261 = scalar_lea.vmem %s0, %s260
      $region44: #{bart_encoder_forward.6} parent=39 // pred_fallthru
        _
      // Predicated region
      $region45: #{bart_encoder_forward.6} parent=39 // pred_check
        %p262 = pneg %p60
      $region46: #{bart_encoder_forward.6} parent=39 // pred_check_branch
        %264 = sbr.rel (%p262) target = $region48
      $region47: #{bart_encoder_forward.6} parent=39 // pred_region
        %p265 = scmp.lt.s32.totalorder %s14, 1
        %s266 = scalar_select %p265, %s14, 1
        %s267 = scalar_lea.vmem %s1, %s266
      $region48: #{bart_encoder_forward.6} parent=39 // pred_fallthru
        _
    $region40: #{bart_encoder_forward.6} parent=5 // pred_fallthru
      _
    %p268 = scmp.le.s32.totalorder 1, %s14
    %p269 = scmp.lt.s32.totalorder %s14, 3
    %p270 = pnand %p268, %p269
    %p271 = pneg %p270
    // Predicated region
    $region49: #{bart_encoder_forward.6} parent=5 // pred_check
      _
    $region50: #{bart_encoder_forward.6} parent=5 // pred_check_branch
      %273 = sbr.rel (%p270) target = $region52
    $region51: #{bart_encoder_forward.6} parent=5 // pred_region
      %s274 = ssub.s32 %s14, 1
      %p275 = scmp.lt.s32.totalorder %s19, 1
      %s276 = scalar_select %p275, %s19, 1
      %s277 = smul.addr %s276, 8
      %s278 = scalar_lea.vmem %s0, %s277
      %p279 = pneg %p40
      %p280 = pneg %p37
      %p281 = scmp.lt.s32.totalorder %s19, 1
      %s282 = scalar_select %p281, %s19, 1
      %s283 = scalar_lea.vmem %s1, %s282
      %p284 = pneg %p66
      %p285 = pneg %p63
      %p286 = pneg %p87
      %p287 = pneg %p84
      %p288 = pneg %p108
      %p289 = pneg %p105
      %p290 = pneg %p129
      %p291 = pneg %p126
      %p292 = pneg %p150
      %p293 = pneg %p147
      %p294 = pneg %p171
      %p295 = pneg %p168
      %p296 = pneg %p192
      %p297 = pneg %p189
      %p298 = pneg %p218
      %p299 = pneg %p215
      %p300 = scmp.lt.s32.totalorder %s19, 1
      %s301 = scalar_select %p300, %s19, 1
      %s302 = smul.addr %s301, 8
      %s303 = scalar_lea.vmem %s8, %s302
      %p304 = scmp.lt.s32.totalorder %s19, 1
      %s305 = scalar_select %p304, %s19, 1
      %s306 = smul.addr %s305, 8
      %s307 = scalar_lea.vmem %s0, %s306
      %p308 = scmp.lt.s32.totalorder %s19, 1
      %s309 = scalar_select %p308, %s19, 1
      %s310 = scalar_lea.vmem %s1, %s309
      %p311 = scmp.lt.s32.totalorder %s19, 1
      %s312 = scalar_select %p311, %s19, 1
      %s313 = smul.addr %s312, 8
      %s314 = scalar_lea.vmem %s8, %s313
      %v315 = vld [vmem:[%s307] sm:$0xff]
      %v316 = vld [vmem:[%s310] sm:$0x1]
      %v317 = vld [vmem:[%s2] sm:$0xff]
      %v318 = vld [vmem:[%s2 + $0x8] sm:$0xff]
      %v319 = vld [vmem:[%s2 + $0x10] sm:$0xff]
      %v320 = vld [vmem:[%s2 + $0x18] sm:$0xff]
      %v321 = vld [vmem:[%s3] sm:$0x1]
      %v323 = vperm.slane %v321, 0
      %vm325 = vcmask 261120
      %v327 = vsel %vm325, %v315, 0
      %329 = vmatpush.msra.mxu0 0.0
      %330 = vmatpush.msra.mxu0 0.0
      %331 = vmatpush.msra.mxu0 0.0
      %332 = vmatpush.msra.mxu0 0.0
      %333 = vmatpush.msra.mxu0 0.0
      %334 = vmatpush.msra.mxu0 0.0
      %335 = vmatpush.msra.mxu0 0.0
      %336 = vmatpush.msra.mxu0 0.0
      %337 = vmatpush.msra.mxu0 0.0
      %338 = vmatpush.msra.mxu0 0.0
      %339 = vmatpush.msra.mxu0 0.0
      %340 = vmatpush.msra.mxu0 0.0
      %341 = vmatpush.msra.mxu0 %v320
      %342 = vmatpush.msra.mxu0 %v319
      %343 = vmatpush.msra.mxu0 %v318
      %344 = vmatpush.msra.mxu0 %v317
      %345 = vmatmul.f32.gmra.mxu0 %v327
      %v346 = vpop.f32.mrf.mxu0
      %v347 = vadd.f32 %v323, %v346
      %348 = vdwg.mxu0
      %v349 = vld [vmem:[%s4] sm:$0xff]
      %v350 = vld [vmem:[%s4 + $0x8] sm:$0xff]
      %v351 = vld [vmem:[%s4 + $0x10] sm:$0xff]
      %v352 = vld [vmem:[%s4 + $0x18] sm:$0xff]
      %v353 = vmul.f32 %v347, 0.35355338
      %v355 = vperm.slane %v316, 0
      %358 = vrot.lane.b32.xlu0 %v347, 96
      %v359 = vpop.permute.xlu0 %358
      %vm360 = vcmask 64512
      %v362 = vsel %vm360, %v353, 0
      %v364 = vsel %vm360, %v359, 0
      %366 = vmatpush.xpose.msra.mxu0 0.0
      %367 = vmatpush.xpose.msra.mxu0 0.0
      %368 = vmatpush.xpose.msra.mxu0 0.0
      %369 = vmatpush.xpose.msra.mxu0 0.0
      %370 = vmatpush.xpose.msra.mxu0 0.0
      %371 = vmatpush.xpose.msra.mxu0 0.0
      %372 = vmatpush.xpose.msra.mxu0 0.0
      %373 = vmatpush.xpose.msra.mxu0 0.0
      %374 = vmatpush.xpose.msra.mxu0 0.0
      %375 = vmatpush.xpose.msra.mxu0 0.0
      %376 = vmatpush.xpose.msra.mxu0 0.0
      %377 = vmatpush.xpose.msra.mxu0 0.0
      %378 = vmatpush.xpose.msra.mxu0 0.0
      %379 = vmatpush.xpose.msra.mxu0 0.0
      %380 = vmatpush.xpose.msra.mxu0 0.0
      %381 = vmatpush.xpose.msra.mxu0 %v364
      %382 = vmatmul.f32.gmra.mxu0 %v362
      %v383 = vpop.f32.mrf.mxu0
      %v384 = vadd.f32 %v355, %v383
      %385 = vdwg.mxu0
      %v386 = vsel %vm360, %v384, -inf
      %387 = vmax.xlane.f32.xlu0 %v386
      %v388 = vpop.xlane.xlu0 %387
      %v389 = vsub.f32 %v384, %v388
      %v390 = vmul.f32 %v389, 1.442695
      %v391 = vpow.pop %v390
      %v392 = vsel %vm360, %v391, 0.0
      %393 = vadd.xlane.f32.xlu0 %v392
      %v394 = vpop.xlane.xlu0 %393
      %v395 = vrcp.pop %v394
      %v396 = vmul.f32 %v391, %v395
      %397 = vrot.lane.b32.xlu0 %v347, 64
      %v398 = vpop.permute.xlu0 %397
      %v401 = vsel %vm360, %v396, 0
      %403 = vmatpush.msra.mxu0 0.0
      %404 = vmatpush.msra.mxu0 0.0
      %405 = vmatpush.msra.mxu0 0.0
      %406 = vmatpush.msra.mxu0 0.0
      %407 = vmatpush.msra.mxu0 0.0
      %408 = vmatpush.msra.mxu0 0.0
      %409 = vmatpush.msra.mxu0 0.0
      %410 = vmatpush.msra.mxu0 0.0
      %411 = vmatpush.msra.mxu0 0.0
      %412 = vmatpush.msra.mxu0 0.0
      %413 = vmatpush.msra.mxu0 0.0
      %414 = vmatpush.msra.mxu0 0.0
      %415 = vmatpush.msra.mxu0 0.0
      %416 = vmatpush.msra.mxu0 0.0
      %417 = vmatpush.msra.mxu0 0.0
      %418 = vmatpush.msra.mxu0 %v398
      %419 = vmatmul.f32.gmra.mxu0 %v401
      %v420 = vpop.f32.mrf.mxu0
      %v421 = vadd.f32 0.0, %v420
      %422 = vdwg.mxu0
      %423 = vrot.lane.b32.xlu0 %v353, 120
      %v424 = vpop.permute.xlu0 %423
      %425 = vrot.lane.b32.xlu0 %v347, 88
      %v426 = vpop.permute.xlu0 %425
      %v427 = vsel %vm360, %v424, 0
      %v429 = vsel %vm360, %v426, 0
      %431 = vmatpush.xpose.msra.mxu0 0.0
      %432 = vmatpush.xpose.msra.mxu0 0.0
      %433 = vmatpush.xpose.msra.mxu0 0.0
      %434 = vmatpush.xpose.msra.mxu0 0.0
      %435 = vmatpush.xpose.msra.mxu0 0.0
      %436 = vmatpush.xpose.msra.mxu0 0.0
      %437 = vmatpush.xpose.msra.mxu0 0.0
      %438 = vmatpush.xpose.msra.mxu0 0.0
      %439 = vmatpush.xpose.msra.mxu0 0.0
      %440 = vmatpush.xpose.msra.mxu0 0.0
      %441 = vmatpush.xpose.msra.mxu0 0.0
      %442 = vmatpush.xpose.msra.mxu0 0.0
      %443 = vmatpush.xpose.msra.mxu0 0.0
      %444 = vmatpush.xpose.msra.mxu0 0.0
      %445 = vmatpush.xpose.msra.mxu0 0.0
      %446 = vmatpush.xpose.msra.mxu0 %v429
      %447 = vmatmul.f32.gmra.mxu0 %v427
      %v448 = vpop.f32.mrf.mxu0
      %v449 = vadd.f32 %v355, %v448
      %450 = vdwg.mxu0
      %v451 = vsel %vm360, %v449, -inf
      %452 = vmax.xlane.f32.xlu0 %v451
      %v453 = vpop.xlane.xlu0 %452
      %v454 = vsub.f32 %v449, %v453
      %v455 = vmul.f32 %v454, 1.442695
      %v456 = vpow.pop %v455
      %v457 = vsel %vm360, %v456, 0.0
      %458 = vadd.xlane.f32.xlu0 %v457
      %v459 = vpop.xlane.xlu0 %458
      %v460 = vrcp.pop %v459
      %v461 = vmul.f32 %v456, %v460
      %462 = vrot.lane.b32.xlu0 %v347, 56
      %v463 = vpop.permute.xlu0 %462
      %v466 = vsel %vm360, %v461, 0
      %468 = vmatpush.msra.mxu0 0.0
      %469 = vmatpush.msra.mxu0 0.0
      %470 = vmatpush.msra.mxu0 0.0
      %471 = vmatpush.msra.mxu0 0.0
      %472 = vmatpush.msra.mxu0 0.0
      %473 = vmatpush.msra.mxu0 0.0
      %474 = vmatpush.msra.mxu0 0.0
      %475 = vmatpush.msra.mxu0 0.0
      %476 = vmatpush.msra.mxu0 0.0
      %477 = vmatpush.msra.mxu0 0.0
      %478 = vmatpush.msra.mxu0 0.0
      %479 = vmatpush.msra.mxu0 0.0
      %480 = vmatpush.msra.mxu0 0.0
      %481 = vmatpush.msra.mxu0 0.0
      %482 = vmatpush.msra.mxu0 0.0
      %483 = vmatpush.msra.mxu0 %v463
      %484 = vmatmul.f32.gmra.mxu0 %v466
      %v485 = vpop.f32.mrf.mxu0
      %v486 = vadd.f32 0.0, %v485
      %487 = vdwg.mxu0
      %v489 = vsel %vm360, %v486, 0
      %491 = vmatpush.msra.mxu0 0.0
      %492 = vmatpush.msra.mxu0 0.0
      %493 = vmatpush.msra.mxu0 0.0
      %494 = vmatpush.msra.mxu0 0.0
      %495 = vmatpush.msra.mxu0 0.0
      %496 = vmatpush.msra.mxu0 0.0
      %497 = vmatpush.msra.mxu0 0.0
      %498 = vmatpush.msra.mxu0 0.0
      %499 = vmatpush.msra.mxu0 0.0
      %500 = vmatpush.msra.mxu0 0.0
      %501 = vmatpush.msra.mxu0 0.0
      %502 = vmatpush.msra.mxu0 0.0
      %503 = vmatpush.msra.mxu0 0.0
      %504 = vmatpush.msra.mxu0 0.0
      %505 = vmatpush.msra.mxu0 0.0
      %506 = vmatpush.msra.mxu0 %v350
      %507 = vmatmul.f32.gmra.mxu0 %v489
      %v508 = vpop.f32.mrf.mxu0
      %v509 = vadd.f32 0.0, %v508
      %510 = vdwg.mxu0
      %v512 = vsel %vm360, %v421, 0
      %514 = vmatpush.msra.mxu0 0.0
      %515 = vmatpush.msra.mxu0 0.0
      %516 = vmatpush.msra.mxu0 0.0
      %517 = vmatpush.msra.mxu0 0.0
      %518 = vmatpush.msra.mxu0 0.0
      %519 = vmatpush.msra.mxu0 0.0
      %520 = vmatpush.msra.mxu0 0.0
      %521 = vmatpush.msra.mxu0 0.0
      %522 = vmatpush.msra.mxu0 0.0
      %523 = vmatpush.msra.mxu0 0.0
      %524 = vmatpush.msra.mxu0 0.0
      %525 = vmatpush.msra.mxu0 0.0
      %526 = vmatpush.msra.mxu0 0.0
      %527 = vmatpush.msra.mxu0 0.0
      %528 = vmatpush.msra.mxu0 0.0
      %529 = vmatpush.msra.mxu0 %v349
      %530 = vmatmul.f32.gmra.mxu0 %v512
      %v531 = vpop.f32.mrf.mxu0
      %v532 = vadd.f32 %v509, %v531
      %533 = vdwg.mxu0
      %534 = vrot.lane.b32.xlu0 %v353, 112
      %v535 = vpop.permute.xlu0 %534
      %536 = vrot.lane.b32.xlu0 %v347, 80
      %v537 = vpop.permute.xlu0 %536
      %v538 = vsel %vm360, %v535, 0
      %v540 = vsel %vm360, %v537, 0
      %542 = vmatpush.xpose.msra.mxu0 0.0
      %543 = vmatpush.xpose.msra.mxu0 0.0
      %544 = vmatpush.xpose.msra.mxu0 0.0
      %545 = vmatpush.xpose.msra.mxu0 0.0
      %546 = vmatpush.xpose.msra.mxu0 0.0
      %547 = vmatpush.xpose.msra.mxu0 0.0
      %548 = vmatpush.xpose.msra.mxu0 0.0
      %549 = vmatpush.xpose.msra.mxu0 0.0
      %550 = vmatpush.xpose.msra.mxu0 0.0
      %551 = vmatpush.xpose.msra.mxu0 0.0
      %552 = vmatpush.xpose.msra.mxu0 0.0
      %553 = vmatpush.xpose.msra.mxu0 0.0
      %554 = vmatpush.xpose.msra.mxu0 0.0
      %555 = vmatpush.xpose.msra.mxu0 0.0
      %556 = vmatpush.xpose.msra.mxu0 0.0
      %557 = vmatpush.xpose.msra.mxu0 %v540
      %558 = vmatmul.f32.gmra.mxu0 %v538
      %v559 = vpop.f32.mrf.mxu0
      %v560 = vadd.f32 %v355, %v559
      %561 = vdwg.mxu0
      %v562 = vsel %vm360, %v560, -inf
      %563 = vmax.xlane.f32.xlu0 %v562
      %v564 = vpop.xlane.xlu0 %563
      %v565 = vsub.f32 %v560, %v564
      %v566 = vmul.f32 %v565, 1.442695
      %v567 = vpow.pop %v566
      %v568 = vsel %vm360, %v567, 0.0
      %569 = vadd.xlane.f32.xlu0 %v568
      %v570 = vpop.xlane.xlu0 %569
      %v571 = vrcp.pop %v570
      %v572 = vmul.f32 %v567, %v571
      %573 = vrot.lane.b32.xlu0 %v347, 48
      %v574 = vpop.permute.xlu0 %573
      %v577 = vsel %vm360, %v572, 0
      %579 = vmatpush.msra.mxu0 0.0
      %580 = vmatpush.msra.mxu0 0.0
      %581 = vmatpush.msra.mxu0 0.0
      %582 = vmatpush.msra.mxu0 0.0
      %583 = vmatpush.msra.mxu0 0.0
      %584 = vmatpush.msra.mxu0 0.0
      %585 = vmatpush.msra.mxu0 0.0
      %586 = vmatpush.msra.mxu0 0.0
      %587 = vmatpush.msra.mxu0 0.0
      %588 = vmatpush.msra.mxu0 0.0
      %589 = vmatpush.msra.mxu0 0.0
      %590 = vmatpush.msra.mxu0 0.0
      %591 = vmatpush.msra.mxu0 0.0
      %592 = vmatpush.msra.mxu0 0.0
      %593 = vmatpush.msra.mxu0 0.0
      %594 = vmatpush.msra.mxu0 %v574
      %595 = vmatmul.f32.gmra.mxu0 %v577
      %v596 = vpop.f32.mrf.mxu0
      %v597 = vadd.f32 0.0, %v596
      %598 = vdwg.mxu0
      %v600 = vsel %vm360, %v597, 0
      %602 = vmatpush.msra.mxu0 0.0
      %603 = vmatpush.msra.mxu0 0.0
      %604 = vmatpush.msra.mxu0 0.0
      %605 = vmatpush.msra.mxu0 0.0
      %606 = vmatpush.msra.mxu0 0.0
      %607 = vmatpush.msra.mxu0 0.0
      %608 = vmatpush.msra.mxu0 0.0
      %609 = vmatpush.msra.mxu0 0.0
      %610 = vmatpush.msra.mxu0 0.0
      %611 = vmatpush.msra.mxu0 0.0
      %612 = vmatpush.msra.mxu0 0.0
      %613 = vmatpush.msra.mxu0 0.0
      %614 = vmatpush.msra.mxu0 0.0
      %615 = vmatpush.msra.mxu0 0.0
      %616 = vmatpush.msra.mxu0 0.0
      %617 = vmatpush.msra.mxu0 %v351
      %618 = vmatmul.f32.gmra.mxu0 %v600
      %v619 = vpop.f32.mrf.mxu0
      %v620 = vadd.f32 0.0, %v619
      %621 = vdwg.mxu0
      %v622 = vadd.f32 %v532, %v620
      %623 = vrot.lane.b32.xlu0 %v353, 104
      %v624 = vpop.permute.xlu0 %623
      %625 = vrot.lane.b32.xlu0 %v347, 72
      %v626 = vpop.permute.xlu0 %625
      %v627 = vsel %vm360, %v624, 0
      %v629 = vsel %vm360, %v626, 0
      %631 = vmatpush.xpose.msra.mxu0 0.0
      %632 = vmatpush.xpose.msra.mxu0 0.0
      %633 = vmatpush.xpose.msra.mxu0 0.0
      %634 = vmatpush.xpose.msra.mxu0 0.0
      %635 = vmatpush.xpose.msra.mxu0 0.0
      %636 = vmatpush.xpose.msra.mxu0 0.0
      %637 = vmatpush.xpose.msra.mxu0 0.0
      %638 = vmatpush.xpose.msra.mxu0 0.0
      %639 = vmatpush.xpose.msra.mxu0 0.0
      %640 = vmatpush.xpose.msra.mxu0 0.0
      %641 = vmatpush.xpose.msra.mxu0 0.0
      %642 = vmatpush.xpose.msra.mxu0 0.0
      %643 = vmatpush.xpose.msra.mxu0 0.0
      %644 = vmatpush.xpose.msra.mxu0 0.0
      %645 = vmatpush.xpose.msra.mxu0 0.0
      %646 = vmatpush.xpose.msra.mxu0 %v629
      %647 = vmatmul.f32.gmra.mxu0 %v627
      %v648 = vpop.f32.mrf.mxu0
      %v649 = vadd.f32 %v355, %v648
      %650 = vdwg.mxu0
      %v651 = vsel %vm360, %v649, -inf
      %652 = vmax.xlane.f32.xlu0 %v651
      %v653 = vpop.xlane.xlu0 %652
      %v654 = vsub.f32 %v649, %v653
      %v655 = vmul.f32 %v654, 1.442695
      %v656 = vpow.pop %v655
      %v657 = vsel %vm360, %v656, 0.0
      %658 = vadd.xlane.f32.xlu0 %v657
      %v659 = vpop.xlane.xlu0 %658
      %v660 = vrcp.pop %v659
      %v661 = vmul.f32 %v656, %v660
      %662 = vrot.lane.b32.xlu0 %v347, 40
      %v663 = vpop.permute.xlu0 %662
      %v666 = vsel %vm360, %v661, 0
      %668 = vmatpush.msra.mxu0 0.0
      %669 = vmatpush.msra.mxu0 0.0
      %670 = vmatpush.msra.mxu0 0.0
      %671 = vmatpush.msra.mxu0 0.0
      %672 = vmatpush.msra.mxu0 0.0
      %673 = vmatpush.msra.mxu0 0.0
      %674 = vmatpush.msra.mxu0 0.0
      %675 = vmatpush.msra.mxu0 0.0
      %676 = vmatpush.msra.mxu0 0.0
      %677 = vmatpush.msra.mxu0 0.0
      %678 = vmatpush.msra.mxu0 0.0
      %679 = vmatpush.msra.mxu0 0.0
      %680 = vmatpush.msra.mxu0 0.0
      %681 = vmatpush.msra.mxu0 0.0
      %682 = vmatpush.msra.mxu0 0.0
      %683 = vmatpush.msra.mxu0 %v663
      %684 = vmatmul.f32.gmra.mxu0 %v666
      %v685 = vpop.f32.mrf.mxu0
      %v686 = vadd.f32 0.0, %v685
      %687 = vdwg.mxu0
      %v689 = vsel %vm360, %v686, 0
      %691 = vmatpush.msra.mxu0 0.0
      %692 = vmatpush.msra.mxu0 0.0
      %693 = vmatpush.msra.mxu0 0.0
      %694 = vmatpush.msra.mxu0 0.0
      %695 = vmatpush.msra.mxu0 0.0
      %696 = vmatpush.msra.mxu0 0.0
      %697 = vmatpush.msra.mxu0 0.0
      %698 = vmatpush.msra.mxu0 0.0
      %699 = vmatpush.msra.mxu0 0.0
      %700 = vmatpush.msra.mxu0 0.0
      %701 = vmatpush.msra.mxu0 0.0
      %702 = vmatpush.msra.mxu0 0.0
      %703 = vmatpush.msra.mxu0 0.0
      %704 = vmatpush.msra.mxu0 0.0
      %705 = vmatpush.msra.mxu0 0.0
      %706 = vmatpush.msra.mxu0 %v352
      %707 = vmatmul.f32.gmra.mxu0 %v689
      %v708 = vpop.f32.mrf.mxu0
      %v709 = vadd.f32 0.0, %v708
      %710 = vdwg.mxu0
      %v711 = vadd.f32 %v622, %v709
      %v712 = vadd.f32 %v315, %v711
      %v713 = vld [vmem:[%s5] sm:$0x1]
      %v715 = vperm.slane %v713, 0
      %v717 = vadd.f32 %v712, %v715
      %v718 = vld [vmem:[%s6] sm:$0x1]
      %v719 = vld [vmem:[%s7] sm:$0x1]
      %v720 = vsel %vm325, %v717, 0.0
      %721 = vadd.xlane.f32.xlu0 %v720
      %v722 = vpop.xlane.xlu0 %721
      %v723 = vrcp.pop 32.0
      %v724 = vmul.f32 32.0, %v723
      %v725 = vsub.f32 1.0, %v724
      %v726 = vmul.f32 %v723, %v725
      %v727 = vadd.f32 %v723, %v726
      %vm728 = vweird.f32 %v723
      %v729 = vsel %vm728, %v723, %v727
      %v730 = vmul.f32 %v722, %v729
      %v731 = vsub.f32 %v717, %v730
      %v732 = vmul.f32 %v731, %v731
      %v733 = vsel %vm325, %v732, 0.0
      %734 = vadd.xlane.f32.xlu0 %v733
      %v735 = vpop.xlane.xlu0 %734
      %v736 = vmul.f32 %v735, %v729
      %v737 = vadd.f32 %v736, 1e-05
      %v738 = vrsqrt.pop %v737
      %v739 = vmul.f32 %v738, %v737
      %v740 = vmul.f32 %v739, %v738
      %v741 = vmul.f32 0.5, %v740
      %v742 = vsub.f32 1.5, %v741
      %v743 = vmul.f32 %v738, %v742
      %vm744 = vweird.f32 %v737
      %vm745 = vweird.f32 %v738
      %vm746 = vmor %vm744, %vm745
      %v747 = vsel %vm746, %v738, %v743
      %v748 = vmul.f32 %v731, %v747
      %v750 = vperm.slane %v718, 0
      %v752 = vmul.f32 %v748, %v750
      %v754 = vperm.slane %v719, 0
      %v756 = vadd.f32 %v752, %v754
      %757 = vst.msk [vmem:[%s314] sm:$0xff] %vm325, %v756
      %p758 = scmp.lt.s32.totalorder %s19, 1
      %s759 = scalar_select %p758, %s19, 1
      %s760 = smul.addr %s759, 8
      %s761 = scalar_lea.vmem %s8, %s760
      // Predicated region
      $region53: #{bart_encoder_forward.6} parent=51 // pred_check
        %p762 = pneg %p215
      $region54: #{bart_encoder_forward.6} parent=51 // pred_check_branch
        %764 = sbr.rel (%p762) target = $region56
      $region55: #{bart_encoder_forward.6} parent=51 // pred_region
        _
      $region56: #{bart_encoder_forward.6} parent=51 // pred_fallthru
        _
    $region52: #{bart_encoder_forward.6} parent=5 // pred_fallthru
      _
    %p765 = scmp.le.s32.totalorder 2, %s14
    // Predicated region
    $region57: #{bart_encoder_forward.6} parent=5 // pred_check
      %p766 = pneg %p765
    $region58: #{bart_encoder_forward.6} parent=5 // pred_check_branch
      %768 = sbr.rel (%p766) target = $region60
    $region59: #{bart_encoder_forward.6} parent=5 // pred_region
      %s769 = ssub.s32 %s14, 2
      // Predicated region
      $region61: #{bart_encoder_forward.6} parent=59 // pred_check
        %p770 = pneg %p221
      $region62: #{bart_encoder_forward.6} parent=59 // pred_check_branch
        %772 = sbr.rel (%p770) target = $region64
      $region63: #{bart_encoder_forward.6} parent=59 // pred_region
        %p773 = scmp.lt.s32.totalorder %s20, 1
        %s774 = scalar_select %p773, %s20, 1
        %s775 = smul.addr %s774, 8
        %s776 = scalar_lea.vmem %s8, %s775
      $region64: #{bart_encoder_forward.6} parent=59 // pred_fallthru
        _
    $region60: #{bart_encoder_forward.6} parent=5 // pred_fallthru
      _
  $region6: #{bart_encoder_forward.6} parent=0 // loop_footer
    %s18 = sadd.s32 1, %s14
  $region7: #{bart_encoder_forward.6} parent=0 // loop_footer_branch
    %13 = sbr.rel target = $region3
  $region8: #{bart_encoder_forward.6} parent=0 // loop_exit
    _

</llo_original>
